<compile_context>
chip_gen: v5e
topology: v5e:2x2
jax: 0.10.0
libtpu: 0.0.40
codegen_flags: <defaults>
</compile_context>

<pallas_src>
import jax
import jax.numpy as jnp
from jax import lax
from jax.experimental import pallas as pl
from jax.experimental.pallas import tpu as pltpu


def lstm_fc_kernel(sent_ref, emb_ref, wih0_ref, whh0_ref, b0_ref,
                   wih1_ref, whh1_ref, b1_ref, wfc_ref, bfc_ref,
                   out_ref, h1_seq):
    """Fused embedding + 2-layer LSTM + Linear + ReLU + LogSoftmax.

    sent_ref : (T, 1)   int32 token ids
    emb_ref  : (Ve, E)  embedding table
    wih0_ref : (E, 4H)  layer-0 input weights (transposed, gate order i,f,o,g)
    whh0_ref : (H, 4H)  layer-0 recurrent weights (transposed)
    b0_ref   : (1, 4H)  layer-0 combined bias (b_ih + b_hh, permuted)
    wih1_ref : (H, 4H)  layer-1 input weights (transposed)
    whh1_ref : (H, 4H)  layer-1 recurrent weights (transposed)
    b1_ref   : (1, 4H)  layer-1 combined bias
    wfc_ref  : (H, V)   fc weight (transposed)
    bfc_ref  : (1, V)   fc bias
    out_ref  : (T, V)   log_softmax(relu(fc(h1)))
    h1_seq   : (T, H)   VMEM scratch holding layer-1 hidden states
    """
    T, V = out_ref.shape
    H = whh0_ref.shape[0]
    V_emb = emb_ref.shape[0]

    # ---- in-kernel embedding lookup: one-hot row-select on the MXU ----
    ids = sent_ref[...]                                              # (T, 1) int32
    iota = lax.broadcasted_iota(jnp.int32, (T, V_emb), 1)
    onehot = (iota == ids).astype(jnp.float32)                       # (T, Ve)
    x = jnp.dot(onehot, emb_ref[...],
                preferred_element_type=jnp.float32)                  # (T, E)

    # ---- hoisted layer-0 input projection for the whole sequence ----
    xg0 = jnp.dot(x, wih0_ref[...],
                  preferred_element_type=jnp.float32) + b0_ref[...]  # (T, 4H)

    def gates(g):
        # gate order is (i, f, o, g): one sigmoid slab + one tanh slab
        s = jax.nn.sigmoid(g[:, :3 * H])
        return s[:, :H], s[:, H:2 * H], s[:, 2 * H:3 * H], jnp.tanh(g[:, 3 * H:])

    # ---- step 0 peeled: h/c start at zero, so all recurrent-state terms vanish ----
    g0 = xg0[0:1, :]                                                 # h0=0 -> no whh0 matmul
    i0, f0, o0, gg0 = gates(g0)
    c0 = i0 * gg0                                                    # f0 * 0 dropped
    h0 = o0 * jnp.tanh(c0)

    g1 = jnp.dot(h0, wih1_ref[...],
                 preferred_element_type=jnp.float32) + b1_ref[...]   # h1=0 -> no whh1 matmul
    i1, f1, o1, gg1 = gates(g1)
    c1 = i1 * gg1
    h1 = o1 * jnp.tanh(c1)
    h1_seq[pl.ds(0, 1), :] = h1

    # Fully unrolled recurrence (T static & tiny): static slices/stores, and the
    # LLO scheduler can overlap layer-0 of step t+1 with layer-1 of step t.
    for t in range(1, T):
        # ---- LSTM layer 0 (only the recurrent matmul is on the serial chain) ----
        g0 = xg0[t:t + 1, :] + jnp.dot(h0, whh0_ref[...],
                                       preferred_element_type=jnp.float32)
        i0, f0, o0, gg0 = gates(g0)
        c0 = f0 * c0 + i0 * gg0
        h0 = o0 * jnp.tanh(c0)

        # ---- LSTM layer 1: two independent MXU pushes issued back-to-back ----
        g1 = (jnp.dot(h0, wih1_ref[...], preferred_element_type=jnp.float32)
              + jnp.dot(h1, whh1_ref[...], preferred_element_type=jnp.float32)
              + b1_ref[...])
        i1, f1, o1, gg1 = gates(g1)
        c1 = f1 * c1 + i1 * gg1
        h1 = o1 * jnp.tanh(c1)

        h1_seq[pl.ds(t, 1), :] = h1

    # ---- epilogue: fc -> relu -> log_softmax, single lane-dense (T, V) store ----
    logits = jnp.dot(h1_seq[...], wfc_ref[...],
                     preferred_element_type=jnp.float32) + bfc_ref[...]
    act = jnp.maximum(logits, 0.0)
    m = jnp.max(act, axis=-1, keepdims=True)
    z = act - m
    lse = jnp.log(jnp.sum(jnp.exp(z), axis=-1, keepdims=True))
    out_ref[...] = z - lse


def rnn_model_forward(sentence, params):
    """Pallas equivalent of RNN_model.forward(sentence, is_test=False)."""
    T = sentence.shape[0]
    H = params["w_hh0"].shape[1]
    V = params["w_fc"].shape[0]

    def perm_gates(a):
        # PyTorch LSTM packs gates as (i, f, g, o); reorder to (i, f, o, g).
        i, f, g, o = jnp.split(a, 4, axis=0)
        return jnp.concatenate([i, f, o, g], axis=0)

    def prep_layer(w_ih, w_hh, b_ih, b_hh):
        wih_t = perm_gates(w_ih).T                                  # (in, 4H)
        whh_t = perm_gates(w_hh).T                                  # (H, 4H)
        b = perm_gates(b_ih + b_hh).reshape(1, 4 * H)               # (1, 4H)
        return wih_t, whh_t, b

    wih0_t, whh0_t, b0 = prep_layer(params["w_ih0"], params["w_hh0"],
                                    params["b_ih0"], params["b_hh0"])
    wih1_t, whh1_t, b1 = prep_layer(params["w_ih1"], params["w_hh1"],
                                    params["b_ih1"], params["b_hh1"])
    wfc_t = params["w_fc"].T                                        # (H, V)
    bfc = params["b_fc"].reshape(1, V)

    emb_tbl = params["embedding"].astype(jnp.float32)               # (Ve, E)
    sent2d = sentence.reshape(T, 1).astype(jnp.int32)               # (T, 1)

    vmem = pl.BlockSpec(memory_space=pltpu.MemorySpace.VMEM)
    kernel = pl.pallas_call(
        lstm_fc_kernel,
        out_shape=jax.ShapeDtypeStruct((T, V), jnp.float32),
        in_specs=[vmem] * 10,
        out_specs=vmem,
        scratch_shapes=[pltpu.VMEM((T, H), jnp.float32)],
    )
    return kernel(sent2d, emb_tbl, wih0_t, whh0_t, b0,
                  wih1_t, whh1_t, b1, wfc_t, bfc)


def reference_forward(sentence, p):
    """Pure-JAX reference mirroring the PyTorch forward exactly."""
    emb = jnp.take(p["embedding"], sentence, axis=0).astype(jnp.float32)
    H = p["w_hh0"].shape[1]

    def run_layer(x_seq, wih, whh, b):
        def step(carry, x_t):
            h, c = carry
            g = x_t @ wih.T + h @ whh.T + b
            i, f, gg, o = jnp.split(g, 4)
            i = jax.nn.sigmoid(i)
            f = jax.nn.sigmoid(f)
            gg = jnp.tanh(gg)
            o = jax.nn.sigmoid(o)
            c = f * c + i * gg
            h = o * jnp.tanh(c)
            return (h, c), h
        zero = jnp.zeros((H,), jnp.float32)
        _, hs = lax.scan(step, (zero, zero), x_seq)
        return hs

    h1 = run_layer(emb, p["w_ih0"], p["w_hh0"], p["b_ih0"] + p["b_hh0"])
    h2 = run_layer(h1, p["w_ih1"], p["w_hh1"], p["b_ih1"] + p["b_hh1"])
    logits = h2 @ p["w_fc"].T + p["b_fc"]
    act = jnp.maximum(logits, 0.0)
    return jax.nn.log_softmax(act, axis=1)


def init_params(key, vocab_len, embedding_dim, hidden_dim):
    ks = jax.random.split(key, 10)
    H, E, V = hidden_dim, embedding_dim, vocab_len
    k_lstm = 1.0 / jnp.sqrt(H)                        # PyTorch LSTM default init range
    w_bound = jnp.sqrt(6.0 / (H + V))                 # weights_init() for the Linear
    u = lambda k, s, b: jax.random.uniform(k, s, jnp.float32, -b, b)
    return {
        "embedding": jax.random.uniform(ks[0], (V, E), jnp.float32, -1.0, 1.0),
        "w_ih0": u(ks[1], (4 * H, E), k_lstm),
        "w_hh0": u(ks[2], (4 * H, H), k_lstm),
        "b_ih0": u(ks[3], (4 * H,), k_lstm),
        "b_hh0": u(ks[4], (4 * H,), k_lstm),
        "w_ih1": u(ks[5], (4 * H, H), k_lstm),
        "w_hh1": u(ks[6], (4 * H, H), k_lstm),
        "b_ih1": u(ks[7], (4 * H,), k_lstm),
        "b_hh1": u(ks[8], (4 * H,), k_lstm),
        "w_fc": u(ks[9], (V, H), w_bound),
        "b_fc": jnp.zeros((V,), jnp.float32),         # weights_init fills bias with 0
    }


if __name__ == "__main__":
    vocab_len = 128
    embedding_dim = 32
    lstm_hidden_dim = 32
    seq_len = 8

    key = jax.random.PRNGKey(0)
    k_params, k_sent = jax.random.split(key)
    params = init_params(k_params, vocab_len, embedding_dim, lstm_hidden_dim)
    sentence = jax.random.randint(k_sent, (seq_len,), 0, vocab_len, dtype=jnp.int32)

    out = rnn_model_forward(sentence, params)
    out = jax.block_until_ready(out)

    ref = jax.block_until_ready(reference_forward(sentence, params))
    assert out.shape == (seq_len, vocab_len)
    assert jnp.allclose(out, ref, atol=1e-5, rtol=1e-5), "mismatch vs JAX reference"

    print("KERNEL_OK")
</pallas_src>

<mosaic_0001>
module attributes {stable_mosaic.version = 11 : i64} {
  func.func @lstm_fc_kernel(%arg0: memref<8x1xi32, #tpu.memory_space<vmem>>, %arg1: memref<128x32xf32, #tpu.memory_space<vmem>>, %arg2: memref<32x128xf32, #tpu.memory_space<vmem>>, %arg3: memref<32x128xf32, #tpu.memory_space<vmem>>, %arg4: memref<1x128xf32, #tpu.memory_space<vmem>>, %arg5: memref<32x128xf32, #tpu.memory_space<vmem>>, %arg6: memref<32x128xf32, #tpu.memory_space<vmem>>, %arg7: memref<1x128xf32, #tpu.memory_space<vmem>>, %arg8: memref<32x128xf32, #tpu.memory_space<vmem>>, %arg9: memref<1x128xf32, #tpu.memory_space<vmem>>, %arg10: memref<8x128xf32, #tpu.memory_space<vmem>>, %arg11: memref<8x32xf32, #tpu.memory_space<vmem>>) attributes {dimension_semantics = [], scalar_prefetch = 0 : i64, scratch_operands = 1 : i64, tpu.core_type = #tpu.core_type<tc>} {
    %c0 = arith.constant 0 : index
    %c0_0 = arith.constant 0 : index
    %0 = vector.load %arg0[%c0, %c0_0] : memref<8x1xi32, #tpu.memory_space<vmem>>, vector<8x1xi32>
    %1 = tpu.iota {dimensions = array<i32: 1>} : vector<8x128xi32>
    %2 = vector.broadcast %0 : vector<8x1xi32> to vector<8x128xi32>
    %3 = arith.cmpi eq, %1, %2 : vector<8x128xi32>
    %4 = arith.extui %3 : vector<8x128xi1> to vector<8x128xi32>
    %5 = arith.sitofp %4 : vector<8x128xi32> to vector<8x128xf32>
    %c0_1 = arith.constant 0 : index
    %c0_2 = arith.constant 0 : index
    %6 = vector.load %arg1[%c0_1, %c0_2] : memref<128x32xf32, #tpu.memory_space<vmem>>, vector<128x32xf32>
    %cst = arith.constant dense<0.000000e+00> : vector<8x32xf32>
    %7 = tpu.matmul %5, %6, %cst {dimension_numbers = #tpu.dot_dimension_numbers<[1], [0], [0], [1], [0, 0, 1, 1], [], []>} : vector<8x128xf32>, vector<128x32xf32>, vector<8x32xf32> -> vector<8x32xf32>
    %c0_3 = arith.constant 0 : index
    %c0_4 = arith.constant 0 : index
    %8 = vector.load %arg2[%c0_3, %c0_4] : memref<32x128xf32, #tpu.memory_space<vmem>>, vector<32x128xf32>
    %cst_5 = arith.constant dense<0.000000e+00> : vector<8x128xf32>
    %9 = tpu.matmul %7, %8, %cst_5 {dimension_numbers = #tpu.dot_dimension_numbers<[1], [0], [0], [1], [0, 0, 1, 1], [], []>} : vector<8x32xf32>, vector<32x128xf32>, vector<8x128xf32> -> vector<8x128xf32>
    %c0_6 = arith.constant 0 : index
    %c0_7 = arith.constant 0 : index
    %10 = vector.load %arg4[%c0_6, %c0_7] : memref<1x128xf32, #tpu.memory_space<vmem>>, vector<1x128xf32>
    %11 = vector.broadcast %10 : vector<1x128xf32> to vector<8x128xf32>
    %12 = arith.addf %9, %11 : vector<8x128xf32>
    %13 = vector.extract_strided_slice %12 {offsets = [0, 0], sizes = [1, 128], strides = [1, 1]} : vector<8x128xf32> to vector<1x128xf32>
    %14 = vector.extract_strided_slice %13 {offsets = [0, 0], sizes = [1, 96], strides = [1, 1]} : vector<1x128xf32> to vector<1x96xf32>
    %15 = arith.negf %14 : vector<1x96xf32>
    %16 = math.exp %15 : vector<1x96xf32>
    %cst_8 = arith.constant 1.000000e+00 : f32
    %17 = vector.broadcast %cst_8 : f32 to vector<1x96xf32>
    %18 = arith.addf %17, %16 : vector<1x96xf32>
    %19 = arith.divf %17, %18 : vector<1x96xf32>
    %20 = vector.extract_strided_slice %19 {offsets = [0, 0], sizes = [1, 32], strides = [1, 1]} : vector<1x96xf32> to vector<1x32xf32>
    %21 = vector.extract_strided_slice %19 {offsets = [0, 64], sizes = [1, 32], strides = [1, 1]} : vector<1x96xf32> to vector<1x32xf32>
    %22 = vector.extract_strided_slice %13 {offsets = [0, 96], sizes = [1, 32], strides = [1, 1]} : vector<1x128xf32> to vector<1x32xf32>
    %23 = math.tanh %22 : vector<1x32xf32>
    %24 = arith.mulf %20, %23 : vector<1x32xf32>
    %25 = math.tanh %24 : vector<1x32xf32>
    %26 = arith.mulf %21, %25 : vector<1x32xf32>
    %c0_9 = arith.constant 0 : index
    %c0_10 = arith.constant 0 : index
    %27 = vector.load %arg5[%c0_9, %c0_10] : memref<32x128xf32, #tpu.memory_space<vmem>>, vector<32x128xf32>
    %cst_11 = arith.constant dense<0.000000e+00> : vector<1x128xf32>
    %28 = tpu.matmul %26, %27, %cst_11 {dimension_numbers = #tpu.dot_dimension_numbers<[1], [0], [0], [1], [0, 0, 1, 1], [], []>} : vector<1x32xf32>, vector<32x128xf32>, vector<1x128xf32> -> vector<1x128xf32>
    %c0_12 = arith.constant 0 : index
    %c0_13 = arith.constant 0 : index
    %29 = vector.load %arg7[%c0_12, %c0_13] : memref<1x128xf32, #tpu.memory_space<vmem>>, vector<1x128xf32>
    %30 = arith.addf %28, %29 : vector<1x128xf32>
    %31 = vector.extract_strided_slice %30 {offsets = [0, 0], sizes = [1, 96], strides = [1, 1]} : vector<1x128xf32> to vector<1x96xf32>
    %32 = arith.negf %31 : vector<1x96xf32>
    %33 = math.exp %32 : vector<1x96xf32>
    %cst_14 = arith.constant 1.000000e+00 : f32
    %34 = vector.broadcast %cst_14 : f32 to vector<1x96xf32>
    %35 = arith.addf %34, %33 : vector<1x96xf32>
    %36 = arith.divf %34, %35 : vector<1x96xf32>
    %37 = vector.extract_strided_slice %36 {offsets = [0, 0], sizes = [1, 32], strides = [1, 1]} : vector<1x96xf32> to vector<1x32xf32>
    %38 = vector.extract_strided_slice %36 {offsets = [0, 64], sizes = [1, 32], strides = [1, 1]} : vector<1x96xf32> to vector<1x32xf32>
    %39 = vector.extract_strided_slice %30 {offsets = [0, 96], sizes = [1, 32], strides = [1, 1]} : vector<1x128xf32> to vector<1x32xf32>
    %40 = math.tanh %39 : vector<1x32xf32>
    %41 = arith.mulf %37, %40 : vector<1x32xf32>
    %42 = math.tanh %41 : vector<1x32xf32>
    %43 = arith.mulf %38, %42 : vector<1x32xf32>
    %c0_15 = arith.constant 0 : index
    %c0_16 = arith.constant 0 : index
    %44 = vector.load %arg11[%c0_15, %c0_16] : memref<8x32xf32, #tpu.memory_space<vmem>>, vector<1x32xf32>
    tpu.vector_store %arg11[%c0_15, %c0_16], %43 {strides = array<i32>} : memref<8x32xf32, #tpu.memory_space<vmem>>, vector<1x32xf32>,
    %45 = vector.extract_strided_slice %12 {offsets = [1, 0], sizes = [1, 128], strides = [1, 1]} : vector<8x128xf32> to vector<1x128xf32>
    %c0_17 = arith.constant 0 : index
    %c0_18 = arith.constant 0 : index
    %46 = vector.load %arg3[%c0_17, %c0_18] : memref<32x128xf32, #tpu.memory_space<vmem>>, vector<32x128xf32>
    %cst_19 = arith.constant dense<0.000000e+00> : vector<1x128xf32>
    %47 = tpu.matmul %26, %46, %cst_19 {dimension_numbers = #tpu.dot_dimension_numbers<[1], [0], [0], [1], [0, 0, 1, 1], [], []>} : vector<1x32xf32>, vector<32x128xf32>, vector<1x128xf32> -> vector<1x128xf32>
    %48 = arith.addf %45, %47 : vector<1x128xf32>
    %49 = vector.extract_strided_slice %48 {offsets = [0, 0], sizes = [1, 96], strides = [1, 1]} : vector<1x128xf32> to vector<1x96xf32>
    %50 = arith.negf %49 : vector<1x96xf32>
    %51 = math.exp %50 : vector<1x96xf32>
    %cst_20 = arith.constant 1.000000e+00 : f32
    %52 = vector.broadcast %cst_20 : f32 to vector<1x96xf32>
    %53 = arith.addf %52, %51 : vector<1x96xf32>
    %54 = arith.divf %52, %53 : vector<1x96xf32>
    %55 = vector.extract_strided_slice %54 {offsets = [0, 0], sizes = [1, 32], strides = [1, 1]} : vector<1x96xf32> to vector<1x32xf32>
    %56 = vector.extract_strided_slice %54 {offsets = [0, 32], sizes = [1, 32], strides = [1, 1]} : vector<1x96xf32> to vector<1x32xf32>
    %57 = vector.extract_strided_slice %54 {offsets = [0, 64], sizes = [1, 32], strides = [1, 1]} : vector<1x96xf32> to vector<1x32xf32>
    %58 = vector.extract_strided_slice %48 {offsets = [0, 96], sizes = [1, 32], strides = [1, 1]} : vector<1x128xf32> to vector<1x32xf32>
    %59 = math.tanh %58 : vector<1x32xf32>
    %60 = arith.mulf %56, %24 : vector<1x32xf32>
    %61 = arith.mulf %55, %59 : vector<1x32xf32>
    %62 = arith.addf %60, %61 : vector<1x32xf32>
    %63 = math.tanh %62 : vector<1x32xf32>
    %64 = arith.mulf %57, %63 : vector<1x32xf32>
    %c0_21 = arith.constant 0 : index
    %c0_22 = arith.constant 0 : index
    %65 = vector.load %arg5[%c0_21, %c0_22] : memref<32x128xf32, #tpu.memory_space<vmem>>, vector<32x128xf32>
    %cst_23 = arith.constant dense<0.000000e+00> : vector<1x128xf32>
    %66 = tpu.matmul %64, %65, %cst_23 {dimension_numbers = #tpu.dot_dimension_numbers<[1], [0], [0], [1], [0, 0, 1, 1], [], []>} : vector<1x32xf32>, vector<32x128xf32>, vector<1x128xf32> -> vector<1x128xf32>
    %c0_24 = arith.constant 0 : index
    %c0_25 = arith.constant 0 : index
    %67 = vector.load %arg6[%c0_24, %c0_25] : memref<32x128xf32, #tpu.memory_space<vmem>>, vector<32x128xf32>
    %cst_26 = arith.constant dense<0.000000e+00> : vector<1x128xf32>
    %68 = tpu.matmul %43, %67, %cst_26 {dimension_numbers = #tpu.dot_dimension_numbers<[1], [0], [0], [1], [0, 0, 1, 1], [], []>} : vector<1x32xf32>, vector<32x128xf32>, vector<1x128xf32> -> vector<1x128xf32>
    %69 = arith.addf %66, %68 : vector<1x128xf32>
    %c0_27 = arith.constant 0 : index
    %c0_28 = arith.constant 0 : index
    %70 = vector.load %arg7[%c0_27, %c0_28] : memref<1x128xf32, #tpu.memory_space<vmem>>, vector<1x128xf32>
    %71 = arith.addf %69, %70 : vector<1x128xf32>
    %72 = vector.extract_strided_slice %71 {offsets = [0, 0], sizes = [1, 96], strides = [1, 1]} : vector<1x128xf32> to vector<1x96xf32>
    %73 = arith.negf %72 : vector<1x96xf32>
    %74 = math.exp %73 : vector<1x96xf32>
    %cst_29 = arith.constant 1.000000e+00 : f32
    %75 = vector.broadcast %cst_29 : f32 to vector<1x96xf32>
    %76 = arith.addf %75, %74 : vector<1x96xf32>
    %77 = arith.divf %75, %76 : vector<1x96xf32>
    %78 = vector.extract_strided_slice %77 {offsets = [0, 0], sizes = [1, 32], strides = [1, 1]} : vector<1x96xf32> to vector<1x32xf32>
    %79 = vector.extract_strided_slice %77 {offsets = [0, 32], sizes = [1, 32], strides = [1, 1]} : vector<1x96xf32> to vector<1x32xf32>
    %80 = vector.extract_strided_slice %77 {offsets = [0, 64], sizes = [1, 32], strides = [1, 1]} : vector<1x96xf32> to vector<1x32xf32>
    %81 = vector.extract_strided_slice %71 {offsets = [0, 96], sizes = [1, 32], strides = [1, 1]} : vector<1x128xf32> to vector<1x32xf32>
    %82 = math.tanh %81 : vector<1x32xf32>
    %83 = arith.mulf %79, %41 : vector<1x32xf32>
    %84 = arith.mulf %78, %82 : vector<1x32xf32>
    %85 = arith.addf %83, %84 : vector<1x32xf32>
    %86 = math.tanh %85 : vector<1x32xf32>
    %87 = arith.mulf %80, %86 : vector<1x32xf32>
    %c1 = arith.constant 1 : index
    %c0_30 = arith.constant 0 : index
    %88 = vector.load %arg11[%c1, %c0_30] : memref<8x32xf32, #tpu.memory_space<vmem>>, vector<1x32xf32>
    tpu.vector_store %arg11[%c1, %c0_30], %87 {strides = array<i32>} : memref<8x32xf32, #tpu.memory_space<vmem>>, vector<1x32xf32>,
    %89 = vector.extract_strided_slice %12 {offsets = [2, 0], sizes = [1, 128], strides = [1, 1]} : vector<8x128xf32> to vector<1x128xf32>
    %c0_31 = arith.constant 0 : index
    %c0_32 = arith.constant 0 : index
    %90 = vector.load %arg3[%c0_31, %c0_32] : memref<32x128xf32, #tpu.memory_space<vmem>>, vector<32x128xf32>
    %cst_33 = arith.constant dense<0.000000e+00> : vector<1x128xf32>
    %91 = tpu.matmul %64, %90, %cst_33 {dimension_numbers = #tpu.dot_dimension_numbers<[1], [0], [0], [1], [0, 0, 1, 1], [], []>} : vector<1x32xf32>, vector<32x128xf32>, vector<1x128xf32> -> vector<1x128xf32>
    %92 = arith.addf %89, %91 : vector<1x128xf32>
    %93 = vector.extract_strided_slice %92 {offsets = [0, 0], sizes = [1, 96], strides = [1, 1]} : vector<1x128xf32> to vector<1x96xf32>
    %94 = arith.negf %93 : vector<1x96xf32>
    %95 = math.exp %94 : vector<1x96xf32>
    %cst_34 = arith.constant 1.000000e+00 : f32
    %96 = vector.broadcast %cst_34 : f32 to vector<1x96xf32>
    %97 = arith.addf %96, %95 : vector<1x96xf32>
    %98 = arith.divf %96, %97 : vector<1x96xf32>
    %99 = vector.extract_strided_slice %98 {offsets = [0, 0], sizes = [1, 32], strides = [1, 1]} : vector<1x96xf32> to vector<1x32xf32>
    %100 = vector.extract_strided_slice %98 {offsets = [0, 32], sizes = [1, 32], strides = [1, 1]} : vector<1x96xf32> to vector<1x32xf32>
    %101 = vector.extract_strided_slice %98 {offsets = [0, 64], sizes = [1, 32], strides = [1, 1]} : vector<1x96xf32> to vector<1x32xf32>
    %102 = vector.extract_strided_slice %92 {offsets = [0, 96], sizes = [1, 32], strides = [1, 1]} : vector<1x128xf32> to vector<1x32xf32>
    %103 = math.tanh %102 : vector<1x32xf32>
    %104 = arith.mulf %100, %62 : vector<1x32xf32>
    %105 = arith.mulf %99, %103 : vector<1x32xf32>
    %106 = arith.addf %104, %105 : vector<1x32xf32>
    %107 = math.tanh %106 : vector<1x32xf32>
    %108 = arith.mulf %101, %107 : vector<1x32xf32>
    %c0_35 = arith.constant 0 : index
    %c0_36 = arith.constant 0 : index
    %109 = vector.load %arg5[%c0_35, %c0_36] : memref<32x128xf32, #tpu.memory_space<vmem>>, vector<32x128xf32>
    %cst_37 = arith.constant dense<0.000000e+00> : vector<1x128xf32>
    %110 = tpu.matmul %108, %109, %cst_37 {dimension_numbers = #tpu.dot_dimension_numbers<[1], [0], [0], [1], [0, 0, 1, 1], [], []>} : vector<1x32xf32>, vector<32x128xf32>, vector<1x128xf32> -> vector<1x128xf32>
    %c0_38 = arith.constant 0 : index
    %c0_39 = arith.constant 0 : index
    %111 = vector.load %arg6[%c0_38, %c0_39] : memref<32x128xf32, #tpu.memory_space<vmem>>, vector<32x128xf32>
    %cst_40 = arith.constant dense<0.000000e+00> : vector<1x128xf32>
    %112 = tpu.matmul %87, %111, %cst_40 {dimension_numbers = #tpu.dot_dimension_numbers<[1], [0], [0], [1], [0, 0, 1, 1], [], []>} : vector<1x32xf32>, vector<32x128xf32>, vector<1x128xf32> -> vector<1x128xf32>
    %113 = arith.addf %110, %112 : vector<1x128xf32>
    %c0_41 = arith.constant 0 : index
    %c0_42 = arith.constant 0 : index
    %114 = vector.load %arg7[%c0_41, %c0_42] : memref<1x128xf32, #tpu.memory_space<vmem>>, vector<1x128xf32>
    %115 = arith.addf %113, %114 : vector<1x128xf32>
    %116 = vector.extract_strided_slice %115 {offsets = [0, 0], sizes = [1, 96], strides = [1, 1]} : vector<1x128xf32> to vector<1x96xf32>
    %117 = arith.negf %116 : vector<1x96xf32>
    %118 = math.exp %117 : vector<1x96xf32>
    %cst_43 = arith.constant 1.000000e+00 : f32
    %119 = vector.broadcast %cst_43 : f32 to vector<1x96xf32>
    %120 = arith.addf %119, %118 : vector<1x96xf32>
    %121 = arith.divf %119, %120 : vector<1x96xf32>
    %122 = vector.extract_strided_slice %121 {offsets = [0, 0], sizes = [1, 32], strides = [1, 1]} : vector<1x96xf32> to vector<1x32xf32>
    %123 = vector.extract_strided_slice %121 {offsets = [0, 32], sizes = [1, 32], strides = [1, 1]} : vector<1x96xf32> to vector<1x32xf32>
    %124 = vector.extract_strided_slice %121 {offsets = [0, 64], sizes = [1, 32], strides = [1, 1]} : vector<1x96xf32> to vector<1x32xf32>
    %125 = vector.extract_strided_slice %115 {offsets = [0, 96], sizes = [1, 32], strides = [1, 1]} : vector<1x128xf32> to vector<1x32xf32>
    %126 = math.tanh %125 : vector<1x32xf32>
    %127 = arith.mulf %123, %85 : vector<1x32xf32>
    %128 = arith.mulf %122, %126 : vector<1x32xf32>
    %129 = arith.addf %127, %128 : vector<1x32xf32>
    %130 = math.tanh %129 : vector<1x32xf32>
    %131 = arith.mulf %124, %130 : vector<1x32xf32>
    %c2 = arith.constant 2 : index
    %c0_44 = arith.constant 0 : index
    %132 = vector.load %arg11[%c2, %c0_44] : memref<8x32xf32, #tpu.memory_space<vmem>>, vector<1x32xf32>
    tpu.vector_store %arg11[%c2, %c0_44], %131 {strides = array<i32>} : memref<8x32xf32, #tpu.memory_space<vmem>>, vector<1x32xf32>,
    %133 = vector.extract_strided_slice %12 {offsets = [3, 0], sizes = [1, 128], strides = [1, 1]} : vector<8x128xf32> to vector<1x128xf32>
    %c0_45 = arith.constant 0 : index
    %c0_46 = arith.constant 0 : index
    %134 = vector.load %arg3[%c0_45, %c0_46] : memref<32x128xf32, #tpu.memory_space<vmem>>, vector<32x128xf32>
    %cst_47 = arith.constant dense<0.000000e+00> : vector<1x128xf32>
    %135 = tpu.matmul %108, %134, %cst_47 {dimension_numbers = #tpu.dot_dimension_numbers<[1], [0], [0], [1], [0, 0, 1, 1], [], []>} : vector<1x32xf32>, vector<32x128xf32>, vector<1x128xf32> -> vector<1x128xf32>
    %136 = arith.addf %133, %135 : vector<1x128xf32>
    %137 = vector.extract_strided_slice %136 {offsets = [0, 0], sizes = [1, 96], strides = [1, 1]} : vector<1x128xf32> to vector<1x96xf32>
    %138 = arith.negf %137 : vector<1x96xf32>
    %139 = math.exp %138 : vector<1x96xf32>
    %cst_48 = arith.constant 1.000000e+00 : f32
    %140 = vector.broadcast %cst_48 : f32 to vector<1x96xf32>
    %141 = arith.addf %140, %139 : vector<1x96xf32>
    %142 = arith.divf %140, %141 : vector<1x96xf32>
    %143 = vector.extract_strided_slice %142 {offsets = [0, 0], sizes = [1, 32], strides = [1, 1]} : vector<1x96xf32> to vector<1x32xf32>
    %144 = vector.extract_strided_slice %142 {offsets = [0, 32], sizes = [1, 32], strides = [1, 1]} : vector<1x96xf32> to vector<1x32xf32>
    %145 = vector.extract_strided_slice %142 {offsets = [0, 64], sizes = [1, 32], strides = [1, 1]} : vector<1x96xf32> to vector<1x32xf32>
    %146 = vector.extract_strided_slice %136 {offsets = [0, 96], sizes = [1, 32], strides = [1, 1]} : vector<1x128xf32> to vector<1x32xf32>
    %147 = math.tanh %146 : vector<1x32xf32>
    %148 = arith.mulf %144, %106 : vector<1x32xf32>
    %149 = arith.mulf %143, %147 : vector<1x32xf32>
    %150 = arith.addf %148, %149 : vector<1x32xf32>
    %151 = math.tanh %150 : vector<1x32xf32>
    %152 = arith.mulf %145, %151 : vector<1x32xf32>
    %c0_49 = arith.constant 0 : index
    %c0_50 = arith.constant 0 : index
    %153 = vector.load %arg5[%c0_49, %c0_50] : memref<32x128xf32, #tpu.memory_space<vmem>>, vector<32x128xf32>
    %cst_51 = arith.constant dense<0.000000e+00> : vector<1x128xf32>
    %154 = tpu.matmul %152, %153, %cst_51 {dimension_numbers = #tpu.dot_dimension_numbers<[1], [0], [0], [1], [0, 0, 1, 1], [], []>} : vector<1x32xf32>, vector<32x128xf32>, vector<1x128xf32> -> vector<1x128xf32>
    %c0_52 = arith.constant 0 : index
    %c0_53 = arith.constant 0 : index
    %155 = vector.load %arg6[%c0_52, %c0_53] : memref<32x128xf32, #tpu.memory_space<vmem>>, vector<32x128xf32>
    %cst_54 = arith.constant dense<0.000000e+00> : vector<1x128xf32>
    %156 = tpu.matmul %131, %155, %cst_54 {dimension_numbers = #tpu.dot_dimension_numbers<[1], [0], [0], [1], [0, 0, 1, 1], [], []>} : vector<1x32xf32>, vector<32x128xf32>, vector<1x128xf32> -> vector<1x128xf32>
    %157 = arith.addf %154, %156 : vector<1x128xf32>
    %c0_55 = arith.constant 0 : index
    %c0_56 = arith.constant 0 : index
    %158 = vector.load %arg7[%c0_55, %c0_56] : memref<1x128xf32, #tpu.memory_space<vmem>>, vector<1x128xf32>
    %159 = arith.addf %157, %158 : vector<1x128xf32>
    %160 = vector.extract_strided_slice %159 {offsets = [0, 0], sizes = [1, 96], strides = [1, 1]} : vector<1x128xf32> to vector<1x96xf32>
    %161 = arith.negf %160 : vector<1x96xf32>
    %162 = math.exp %161 : vector<1x96xf32>
    %cst_57 = arith.constant 1.000000e+00 : f32
    %163 = vector.broadcast %cst_57 : f32 to vector<1x96xf32>
    %164 = arith.addf %163, %162 : vector<1x96xf32>
    %165 = arith.divf %163, %164 : vector<1x96xf32>
    %166 = vector.extract_strided_slice %165 {offsets = [0, 0], sizes = [1, 32], strides = [1, 1]} : vector<1x96xf32> to vector<1x32xf32>
    %167 = vector.extract_strided_slice %165 {offsets = [0, 32], sizes = [1, 32], strides = [1, 1]} : vector<1x96xf32> to vector<1x32xf32>
    %168 = vector.extract_strided_slice %165 {offsets = [0, 64], sizes = [1, 32], strides = [1, 1]} : vector<1x96xf32> to vector<1x32xf32>
    %169 = vector.extract_strided_slice %159 {offsets = [0, 96], sizes = [1, 32], strides = [1, 1]} : vector<1x128xf32> to vector<1x32xf32>
    %170 = math.tanh %169 : vector<1x32xf32>
    %171 = arith.mulf %167, %129 : vector<1x32xf32>
    %172 = arith.mulf %166, %170 : vector<1x32xf32>
    %173 = arith.addf %171, %172 : vector<1x32xf32>
    %174 = math.tanh %173 : vector<1x32xf32>
    %175 = arith.mulf %168, %174 : vector<1x32xf32>
    %c3 = arith.constant 3 : index
    %c0_58 = arith.constant 0 : index
    %176 = vector.load %arg11[%c3, %c0_58] : memref<8x32xf32, #tpu.memory_space<vmem>>, vector<1x32xf32>
    tpu.vector_store %arg11[%c3, %c0_58], %175 {strides = array<i32>} : memref<8x32xf32, #tpu.memory_space<vmem>>, vector<1x32xf32>,
    %177 = vector.extract_strided_slice %12 {offsets = [4, 0], sizes = [1, 128], strides = [1, 1]} : vector<8x128xf32> to vector<1x128xf32>
    %c0_59 = arith.constant 0 : index
    %c0_60 = arith.constant 0 : index
    %178 = vector.load %arg3[%c0_59, %c0_60] : memref<32x128xf32, #tpu.memory_space<vmem>>, vector<32x128xf32>
    %cst_61 = arith.constant dense<0.000000e+00> : vector<1x128xf32>
    %179 = tpu.matmul %152, %178, %cst_61 {dimension_numbers = #tpu.dot_dimension_numbers<[1], [0], [0], [1], [0, 0, 1, 1], [], []>} : vector<1x32xf32>, vector<32x128xf32>, vector<1x128xf32> -> vector<1x128xf32>
    %180 = arith.addf %177, %179 : vector<1x128xf32>
    %181 = vector.extract_strided_slice %180 {offsets = [0, 0], sizes = [1, 96], strides = [1, 1]} : vector<1x128xf32> to vector<1x96xf32>
    %182 = arith.negf %181 : vector<1x96xf32>
    %183 = math.exp %182 : vector<1x96xf32>
    %cst_62 = arith.constant 1.000000e+00 : f32
    %184 = vector.broadcast %cst_62 : f32 to vector<1x96xf32>
    %185 = arith.addf %184, %183 : vector<1x96xf32>
    %186 = arith.divf %184, %185 : vector<1x96xf32>
    %187 = vector.extract_strided_slice %186 {offsets = [0, 0], sizes = [1, 32], strides = [1, 1]} : vector<1x96xf32> to vector<1x32xf32>
    %188 = vector.extract_strided_slice %186 {offsets = [0, 32], sizes = [1, 32], strides = [1, 1]} : vector<1x96xf32> to vector<1x32xf32>
    %189 = vector.extract_strided_slice %186 {offsets = [0, 64], sizes = [1, 32], strides = [1, 1]} : vector<1x96xf32> to vector<1x32xf32>
    %190 = vector.extract_strided_slice %180 {offsets = [0, 96], sizes = [1, 32], strides = [1, 1]} : vector<1x128xf32> to vector<1x32xf32>
    %191 = math.tanh %190 : vector<1x32xf32>
    %192 = arith.mulf %188, %150 : vector<1x32xf32>
    %193 = arith.mulf %187, %191 : vector<1x32xf32>
    %194 = arith.addf %192, %193 : vector<1x32xf32>
    %195 = math.tanh %194 : vector<1x32xf32>
    %196 = arith.mulf %189, %195 : vector<1x32xf32>
    %c0_63 = arith.constant 0 : index
    %c0_64 = arith.constant 0 : index
    %197 = vector.load %arg5[%c0_63, %c0_64] : memref<32x128xf32, #tpu.memory_space<vmem>>, vector<32x128xf32>
    %cst_65 = arith.constant dense<0.000000e+00> : vector<1x128xf32>
    %198 = tpu.matmul %196, %197, %cst_65 {dimension_numbers = #tpu.dot_dimension_numbers<[1], [0], [0], [1], [0, 0, 1, 1], [], []>} : vector<1x32xf32>, vector<32x128xf32>, vector<1x128xf32> -> vector<1x128xf32>
    %c0_66 = arith.constant 0 : index
    %c0_67 = arith.constant 0 : index
    %199 = vector.load %arg6[%c0_66, %c0_67] : memref<32x128xf32, #tpu.memory_space<vmem>>, vector<32x128xf32>
    %cst_68 = arith.constant dense<0.000000e+00> : vector<1x128xf32>
    %200 = tpu.matmul %175, %199, %cst_68 {dimension_numbers = #tpu.dot_dimension_numbers<[1], [0], [0], [1], [0, 0, 1, 1], [], []>} : vector<1x32xf32>, vector<32x128xf32>, vector<1x128xf32> -> vector<1x128xf32>
    %201 = arith.addf %198, %200 : vector<1x128xf32>
    %c0_69 = arith.constant 0 : index
    %c0_70 = arith.constant 0 : index
    %202 = vector.load %arg7[%c0_69, %c0_70] : memref<1x128xf32, #tpu.memory_space<vmem>>, vector<1x128xf32>
    %203 = arith.addf %201, %202 : vector<1x128xf32>
    %204 = vector.extract_strided_slice %203 {offsets = [0, 0], sizes = [1, 96], strides = [1, 1]} : vector<1x128xf32> to vector<1x96xf32>
    %205 = arith.negf %204 : vector<1x96xf32>
    %206 = math.exp %205 : vector<1x96xf32>
    %cst_71 = arith.constant 1.000000e+00 : f32
    %207 = vector.broadcast %cst_71 : f32 to vector<1x96xf32>
    %208 = arith.addf %207, %206 : vector<1x96xf32>
    %209 = arith.divf %207, %208 : vector<1x96xf32>
    %210 = vector.extract_strided_slice %209 {offsets = [0, 0], sizes = [1, 32], strides = [1, 1]} : vector<1x96xf32> to vector<1x32xf32>
    %211 = vector.extract_strided_slice %209 {offsets = [0, 32], sizes = [1, 32], strides = [1, 1]} : vector<1x96xf32> to vector<1x32xf32>
    %212 = vector.extract_strided_slice %209 {offsets = [0, 64], sizes = [1, 32], strides = [1, 1]} : vector<1x96xf32> to vector<1x32xf32>
    %213 = vector.extract_strided_slice %203 {offsets = [0, 96], sizes = [1, 32], strides = [1, 1]} : vector<1x128xf32> to vector<1x32xf32>
    %214 = math.tanh %213 : vector<1x32xf32>
    %215 = arith.mulf %211, %173 : vector<1x32xf32>
    %216 = arith.mulf %210, %214 : vector<1x32xf32>
    %217 = arith.addf %215, %216 : vector<1x32xf32>
    %218 = math.tanh %217 : vector<1x32xf32>
    %219 = arith.mulf %212, %218 : vector<1x32xf32>
    %c4 = arith.constant 4 : index
    %c0_72 = arith.constant 0 : index
    %220 = vector.load %arg11[%c4, %c0_72] : memref<8x32xf32, #tpu.memory_space<vmem>>, vector<1x32xf32>
    tpu.vector_store %arg11[%c4, %c0_72], %219 {strides = array<i32>} : memref<8x32xf32, #tpu.memory_space<vmem>>, vector<1x32xf32>,
    %221 = vector.extract_strided_slice %12 {offsets = [5, 0], sizes = [1, 128], strides = [1, 1]} : vector<8x128xf32> to vector<1x128xf32>
    %c0_73 = arith.constant 0 : index
    %c0_74 = arith.constant 0 : index
    %222 = vector.load %arg3[%c0_73, %c0_74] : memref<32x128xf32, #tpu.memory_space<vmem>>, vector<32x128xf32>
    %cst_75 = arith.constant dense<0.000000e+00> : vector<1x128xf32>
    %223 = tpu.matmul %196, %222, %cst_75 {dimension_numbers = #tpu.dot_dimension_numbers<[1], [0], [0], [1], [0, 0, 1, 1], [], []>} : vector<1x32xf32>, vector<32x128xf32>, vector<1x128xf32> -> vector<1x128xf32>
    %224 = arith.addf %221, %223 : vector<1x128xf32>
    %225 = vector.extract_strided_slice %224 {offsets = [0, 0], sizes = [1, 96], strides = [1, 1]} : vector<1x128xf32> to vector<1x96xf32>
    %226 = arith.negf %225 : vector<1x96xf32>
    %227 = math.exp %226 : vector<1x96xf32>
    %cst_76 = arith.constant 1.000000e+00 : f32
    %228 = vector.broadcast %cst_76 : f32 to vector<1x96xf32>
    %229 = arith.addf %228, %227 : vector<1x96xf32>
    %230 = arith.divf %228, %229 : vector<1x96xf32>
    %231 = vector.extract_strided_slice %230 {offsets = [0, 0], sizes = [1, 32], strides = [1, 1]} : vector<1x96xf32> to vector<1x32xf32>
    %232 = vector.extract_strided_slice %230 {offsets = [0, 32], sizes = [1, 32], strides = [1, 1]} : vector<1x96xf32> to vector<1x32xf32>
    %233 = vector.extract_strided_slice %230 {offsets = [0, 64], sizes = [1, 32], strides = [1, 1]} : vector<1x96xf32> to vector<1x32xf32>
    %234 = vector.extract_strided_slice %224 {offsets = [0, 96], sizes = [1, 32], strides = [1, 1]} : vector<1x128xf32> to vector<1x32xf32>
    %235 = math.tanh %234 : vector<1x32xf32>
    %236 = arith.mulf %232, %194 : vector<1x32xf32>
    %237 = arith.mulf %231, %235 : vector<1x32xf32>
    %238 = arith.addf %236, %237 : vector<1x32xf32>
    %239 = math.tanh %238 : vector<1x32xf32>
    %240 = arith.mulf %233, %239 : vector<1x32xf32>
    %c0_77 = arith.constant 0 : index
    %c0_78 = arith.constant 0 : index
    %241 = vector.load %arg5[%c0_77, %c0_78] : memref<32x128xf32, #tpu.memory_space<vmem>>, vector<32x128xf32>
    %cst_79 = arith.constant dense<0.000000e+00> : vector<1x128xf32>
    %242 = tpu.matmul %240, %241, %cst_79 {dimension_numbers = #tpu.dot_dimension_numbers<[1], [0], [0], [1], [0, 0, 1, 1], [], []>} : vector<1x32xf32>, vector<32x128xf32>, vector<1x128xf32> -> vector<1x128xf32>
    %c0_80 = arith.constant 0 : index
    %c0_81 = arith.constant 0 : index
    %243 = vector.load %arg6[%c0_80, %c0_81] : memref<32x128xf32, #tpu.memory_space<vmem>>, vector<32x128xf32>
    %cst_82 = arith.constant dense<0.000000e+00> : vector<1x128xf32>
    %244 = tpu.matmul %219, %243, %cst_82 {dimension_numbers = #tpu.dot_dimension_numbers<[1], [0], [0], [1], [0, 0, 1, 1], [], []>} : vector<1x32xf32>, vector<32x128xf32>, vector<1x128xf32> -> vector<1x128xf32>
    %245 = arith.addf %242, %244 : vector<1x128xf32>
    %c0_83 = arith.constant 0 : index
    %c0_84 = arith.constant 0 : index
    %246 = vector.load %arg7[%c0_83, %c0_84] : memref<1x128xf32, #tpu.memory_space<vmem>>, vector<1x128xf32>
    %247 = arith.addf %245, %246 : vector<1x128xf32>
    %248 = vector.extract_strided_slice %247 {offsets = [0, 0], sizes = [1, 96], strides = [1, 1]} : vector<1x128xf32> to vector<1x96xf32>
    %249 = arith.negf %248 : vector<1x96xf32>
    %250 = math.exp %249 : vector<1x96xf32>
    %cst_85 = arith.constant 1.000000e+00 : f32
    %251 = vector.broadcast %cst_85 : f32 to vector<1x96xf32>
    %252 = arith.addf %251, %250 : vector<1x96xf32>
    %253 = arith.divf %251, %252 : vector<1x96xf32>
    %254 = vector.extract_strided_slice %253 {offsets = [0, 0], sizes = [1, 32], strides = [1, 1]} : vector<1x96xf32> to vector<1x32xf32>
    %255 = vector.extract_strided_slice %253 {offsets = [0, 32], sizes = [1, 32], strides = [1, 1]} : vector<1x96xf32> to vector<1x32xf32>
    %256 = vector.extract_strided_slice %253 {offsets = [0, 64], sizes = [1, 32], strides = [1, 1]} : vector<1x96xf32> to vector<1x32xf32>
    %257 = vector.extract_strided_slice %247 {offsets = [0, 96], sizes = [1, 32], strides = [1, 1]} : vector<1x128xf32> to vector<1x32xf32>
    %258 = math.tanh %257 : vector<1x32xf32>
    %259 = arith.mulf %255, %217 : vector<1x32xf32>
    %260 = arith.mulf %254, %258 : vector<1x32xf32>
    %261 = arith.addf %259, %260 : vector<1x32xf32>
    %262 = math.tanh %261 : vector<1x32xf32>
    %263 = arith.mulf %256, %262 : vector<1x32xf32>
    %c5 = arith.constant 5 : index
    %c0_86 = arith.constant 0 : index
    %264 = vector.load %arg11[%c5, %c0_86] : memref<8x32xf32, #tpu.memory_space<vmem>>, vector<1x32xf32>
    tpu.vector_store %arg11[%c5, %c0_86], %263 {strides = array<i32>} : memref<8x32xf32, #tpu.memory_space<vmem>>, vector<1x32xf32>,
    %265 = vector.extract_strided_slice %12 {offsets = [6, 0], sizes = [1, 128], strides = [1, 1]} : vector<8x128xf32> to vector<1x128xf32>
    %c0_87 = arith.constant 0 : index
    %c0_88 = arith.constant 0 : index
    %266 = vector.load %arg3[%c0_87, %c0_88] : memref<32x128xf32, #tpu.memory_space<vmem>>, vector<32x128xf32>
    %cst_89 = arith.constant dense<0.000000e+00> : vector<1x128xf32>
    %267 = tpu.matmul %240, %266, %cst_89 {dimension_numbers = #tpu.dot_dimension_numbers<[1], [0], [0], [1], [0, 0, 1, 1], [], []>} : vector<1x32xf32>, vector<32x128xf32>, vector<1x128xf32> -> vector<1x128xf32>
    %268 = arith.addf %265, %267 : vector<1x128xf32>
    %269 = vector.extract_strided_slice %268 {offsets = [0, 0], sizes = [1, 96], strides = [1, 1]} : vector<1x128xf32> to vector<1x96xf32>
    %270 = arith.negf %269 : vector<1x96xf32>
    %271 = math.exp %270 : vector<1x96xf32>
    %cst_90 = arith.constant 1.000000e+00 : f32
    %272 = vector.broadcast %cst_90 : f32 to vector<1x96xf32>
    %273 = arith.addf %272, %271 : vector<1x96xf32>
    %274 = arith.divf %272, %273 : vector<1x96xf32>
    %275 = vector.extract_strided_slice %274 {offsets = [0, 0], sizes = [1, 32], strides = [1, 1]} : vector<1x96xf32> to vector<1x32xf32>
    %276 = vector.extract_strided_slice %274 {offsets = [0, 32], sizes = [1, 32], strides = [1, 1]} : vector<1x96xf32> to vector<1x32xf32>
    %277 = vector.extract_strided_slice %274 {offsets = [0, 64], sizes = [1, 32], strides = [1, 1]} : vector<1x96xf32> to vector<1x32xf32>
    %278 = vector.extract_strided_slice %268 {offsets = [0, 96], sizes = [1, 32], strides = [1, 1]} : vector<1x128xf32> to vector<1x32xf32>
    %279 = math.tanh %278 : vector<1x32xf32>
    %280 = arith.mulf %276, %238 : vector<1x32xf32>
    %281 = arith.mulf %275, %279 : vector<1x32xf32>
    %282 = arith.addf %280, %281 : vector<1x32xf32>
    %283 = math.tanh %282 : vector<1x32xf32>
    %284 = arith.mulf %277, %283 : vector<1x32xf32>
    %c0_91 = arith.constant 0 : index
    %c0_92 = arith.constant 0 : index
    %285 = vector.load %arg5[%c0_91, %c0_92] : memref<32x128xf32, #tpu.memory_space<vmem>>, vector<32x128xf32>
    %cst_93 = arith.constant dense<0.000000e+00> : vector<1x128xf32>
    %286 = tpu.matmul %284, %285, %cst_93 {dimension_numbers = #tpu.dot_dimension_numbers<[1], [0], [0], [1], [0, 0, 1, 1], [], []>} : vector<1x32xf32>, vector<32x128xf32>, vector<1x128xf32> -> vector<1x128xf32>
    %c0_94 = arith.constant 0 : index
    %c0_95 = arith.constant 0 : index
    %287 = vector.load %arg6[%c0_94, %c0_95] : memref<32x128xf32, #tpu.memory_space<vmem>>, vector<32x128xf32>
    %cst_96 = arith.constant dense<0.000000e+00> : vector<1x128xf32>
    %288 = tpu.matmul %263, %287, %cst_96 {dimension_numbers = #tpu.dot_dimension_numbers<[1], [0], [0], [1], [0, 0, 1, 1], [], []>} : vector<1x32xf32>, vector<32x128xf32>, vector<1x128xf32> -> vector<1x128xf32>
    %289 = arith.addf %286, %288 : vector<1x128xf32>
    %c0_97 = arith.constant 0 : index
    %c0_98 = arith.constant 0 : index
    %290 = vector.load %arg7[%c0_97, %c0_98] : memref<1x128xf32, #tpu.memory_space<vmem>>, vector<1x128xf32>
    %291 = arith.addf %289, %290 : vector<1x128xf32>
    %292 = vector.extract_strided_slice %291 {offsets = [0, 0], sizes = [1, 96], strides = [1, 1]} : vector<1x128xf32> to vector<1x96xf32>
    %293 = arith.negf %292 : vector<1x96xf32>
    %294 = math.exp %293 : vector<1x96xf32>
    %cst_99 = arith.constant 1.000000e+00 : f32
    %295 = vector.broadcast %cst_99 : f32 to vector<1x96xf32>
    %296 = arith.addf %295, %294 : vector<1x96xf32>
    %297 = arith.divf %295, %296 : vector<1x96xf32>
    %298 = vector.extract_strided_slice %297 {offsets = [0, 0], sizes = [1, 32], strides = [1, 1]} : vector<1x96xf32> to vector<1x32xf32>
    %299 = vector.extract_strided_slice %297 {offsets = [0, 32], sizes = [1, 32], strides = [1, 1]} : vector<1x96xf32> to vector<1x32xf32>
    %300 = vector.extract_strided_slice %297 {offsets = [0, 64], sizes = [1, 32], strides = [1, 1]} : vector<1x96xf32> to vector<1x32xf32>
    %301 = vector.extract_strided_slice %291 {offsets = [0, 96], sizes = [1, 32], strides = [1, 1]} : vector<1x128xf32> to vector<1x32xf32>
    %302 = math.tanh %301 : vector<1x32xf32>
    %303 = arith.mulf %299, %261 : vector<1x32xf32>
    %304 = arith.mulf %298, %302 : vector<1x32xf32>
    %305 = arith.addf %303, %304 : vector<1x32xf32>
    %306 = math.tanh %305 : vector<1x32xf32>
    %307 = arith.mulf %300, %306 : vector<1x32xf32>
    %c6 = arith.constant 6 : index
    %c0_100 = arith.constant 0 : index
    %308 = vector.load %arg11[%c6, %c0_100] : memref<8x32xf32, #tpu.memory_space<vmem>>, vector<1x32xf32>
    tpu.vector_store %arg11[%c6, %c0_100], %307 {strides = array<i32>} : memref<8x32xf32, #tpu.memory_space<vmem>>, vector<1x32xf32>,
    %309 = vector.extract_strided_slice %12 {offsets = [7, 0], sizes = [1, 128], strides = [1, 1]} : vector<8x128xf32> to vector<1x128xf32>
    %c0_101 = arith.constant 0 : index
    %c0_102 = arith.constant 0 : index
    %310 = vector.load %arg3[%c0_101, %c0_102] : memref<32x128xf32, #tpu.memory_space<vmem>>, vector<32x128xf32>
    %cst_103 = arith.constant dense<0.000000e+00> : vector<1x128xf32>
    %311 = tpu.matmul %284, %310, %cst_103 {dimension_numbers = #tpu.dot_dimension_numbers<[1], [0], [0], [1], [0, 0, 1, 1], [], []>} : vector<1x32xf32>, vector<32x128xf32>, vector<1x128xf32> -> vector<1x128xf32>
    %312 = arith.addf %309, %311 : vector<1x128xf32>
    %313 = vector.extract_strided_slice %312 {offsets = [0, 0], sizes = [1, 96], strides = [1, 1]} : vector<1x128xf32> to vector<1x96xf32>
    %314 = arith.negf %313 : vector<1x96xf32>
    %315 = math.exp %314 : vector<1x96xf32>
    %cst_104 = arith.constant 1.000000e+00 : f32
    %316 = vector.broadcast %cst_104 : f32 to vector<1x96xf32>
    %317 = arith.addf %316, %315 : vector<1x96xf32>
    %318 = arith.divf %316, %317 : vector<1x96xf32>
    %319 = vector.extract_strided_slice %318 {offsets = [0, 0], sizes = [1, 32], strides = [1, 1]} : vector<1x96xf32> to vector<1x32xf32>
    %320 = vector.extract_strided_slice %318 {offsets = [0, 32], sizes = [1, 32], strides = [1, 1]} : vector<1x96xf32> to vector<1x32xf32>
    %321 = vector.extract_strided_slice %318 {offsets = [0, 64], sizes = [1, 32], strides = [1, 1]} : vector<1x96xf32> to vector<1x32xf32>
    %322 = vector.extract_strided_slice %312 {offsets = [0, 96], sizes = [1, 32], strides = [1, 1]} : vector<1x128xf32> to vector<1x32xf32>
    %323 = math.tanh %322 : vector<1x32xf32>
    %324 = arith.mulf %320, %282 : vector<1x32xf32>
    %325 = arith.mulf %319, %323 : vector<1x32xf32>
    %326 = arith.addf %324, %325 : vector<1x32xf32>
    %327 = math.tanh %326 : vector<1x32xf32>
    %328 = arith.mulf %321, %327 : vector<1x32xf32>
    %c0_105 = arith.constant 0 : index
    %c0_106 = arith.constant 0 : index
    %329 = vector.load %arg5[%c0_105, %c0_106] : memref<32x128xf32, #tpu.memory_space<vmem>>, vector<32x128xf32>
    %cst_107 = arith.constant dense<0.000000e+00> : vector<1x128xf32>
    %330 = tpu.matmul %328, %329, %cst_107 {dimension_numbers = #tpu.dot_dimension_numbers<[1], [0], [0], [1], [0, 0, 1, 1], [], []>} : vector<1x32xf32>, vector<32x128xf32>, vector<1x128xf32> -> vector<1x128xf32>
    %c0_108 = arith.constant 0 : index
    %c0_109 = arith.constant 0 : index
    %331 = vector.load %arg6[%c0_108, %c0_109] : memref<32x128xf32, #tpu.memory_space<vmem>>, vector<32x128xf32>
    %cst_110 = arith.constant dense<0.000000e+00> : vector<1x128xf32>
    %332 = tpu.matmul %307, %331, %cst_110 {dimension_numbers = #tpu.dot_dimension_numbers<[1], [0], [0], [1], [0, 0, 1, 1], [], []>} : vector<1x32xf32>, vector<32x128xf32>, vector<1x128xf32> -> vector<1x128xf32>
    %333 = arith.addf %330, %332 : vector<1x128xf32>
    %c0_111 = arith.constant 0 : index
    %c0_112 = arith.constant 0 : index
    %334 = vector.load %arg7[%c0_111, %c0_112] : memref<1x128xf32, #tpu.memory_space<vmem>>, vector<1x128xf32>
    %335 = arith.addf %333, %334 : vector<1x128xf32>
    %336 = vector.extract_strided_slice %335 {offsets = [0, 0], sizes = [1, 96], strides = [1, 1]} : vector<1x128xf32> to vector<1x96xf32>
    %337 = arith.negf %336 : vector<1x96xf32>
    %338 = math.exp %337 : vector<1x96xf32>
    %cst_113 = arith.constant 1.000000e+00 : f32
    %339 = vector.broadcast %cst_113 : f32 to vector<1x96xf32>
    %340 = arith.addf %339, %338 : vector<1x96xf32>
    %341 = arith.divf %339, %340 : vector<1x96xf32>
    %342 = vector.extract_strided_slice %341 {offsets = [0, 0], sizes = [1, 32], strides = [1, 1]} : vector<1x96xf32> to vector<1x32xf32>
    %343 = vector.extract_strided_slice %341 {offsets = [0, 32], sizes = [1, 32], strides = [1, 1]} : vector<1x96xf32> to vector<1x32xf32>
    %344 = vector.extract_strided_slice %341 {offsets = [0, 64], sizes = [1, 32], strides = [1, 1]} : vector<1x96xf32> to vector<1x32xf32>
    %345 = vector.extract_strided_slice %335 {offsets = [0, 96], sizes = [1, 32], strides = [1, 1]} : vector<1x128xf32> to vector<1x32xf32>
    %346 = math.tanh %345 : vector<1x32xf32>
    %347 = arith.mulf %343, %305 : vector<1x32xf32>
    %348 = arith.mulf %342, %346 : vector<1x32xf32>
    %349 = arith.addf %347, %348 : vector<1x32xf32>
    %350 = math.tanh %349 : vector<1x32xf32>
    %351 = arith.mulf %344, %350 : vector<1x32xf32>
    %c7 = arith.constant 7 : index
    %c0_114 = arith.constant 0 : index
    %352 = vector.load %arg11[%c7, %c0_114] : memref<8x32xf32, #tpu.memory_space<vmem>>, vector<1x32xf32>
    tpu.vector_store %arg11[%c7, %c0_114], %351 {strides = array<i32>} : memref<8x32xf32, #tpu.memory_space<vmem>>, vector<1x32xf32>,
    %c0_115 = arith.constant 0 : index
    %c0_116 = arith.constant 0 : index
    %353 = vector.load %arg11[%c0_115, %c0_116] : memref<8x32xf32, #tpu.memory_space<vmem>>, vector<8x32xf32>
    %c0_117 = arith.constant 0 : index
    %c0_118 = arith.constant 0 : index
    %354 = vector.load %arg8[%c0_117, %c0_118] : memref<32x128xf32, #tpu.memory_space<vmem>>, vector<32x128xf32>
    %cst_119 = arith.constant dense<0.000000e+00> : vector<8x128xf32>
    %355 = tpu.matmul %353, %354, %cst_119 {dimension_numbers = #tpu.dot_dimension_numbers<[1], [0], [0], [1], [0, 0, 1, 1], [], []>} : vector<8x32xf32>, vector<32x128xf32>, vector<8x128xf32> -> vector<8x128xf32>
    %c0_120 = arith.constant 0 : index
    %c0_121 = arith.constant 0 : index
    %356 = vector.load %arg9[%c0_120, %c0_121] : memref<1x128xf32, #tpu.memory_space<vmem>>, vector<1x128xf32>
    %357 = vector.broadcast %356 : vector<1x128xf32> to vector<8x128xf32>
    %358 = arith.addf %355, %357 : vector<8x128xf32>
    %cst_122 = arith.constant 0.000000e+00 : f32
    %359 = vector.broadcast %cst_122 : f32 to vector<8x128xf32>
    %360 = arith.maximumf %358, %359 : vector<8x128xf32>
    %cst_123 = arith.constant dense<0xFF800000> : vector<8xf32>
    %361 = vector.multi_reduction <maximumf>, %360, %cst_123 [1] : vector<8x128xf32> to vector<8xf32>
    %362 = vector.shape_cast %361 : vector<8xf32> to vector<8x1xf32>
    %363 = vector.broadcast %362 : vector<8x1xf32> to vector<8x128xf32>
    %364 = arith.subf %360, %363 : vector<8x128xf32>
    %365 = math.exp %364 : vector<8x128xf32>
    %cst_124 = arith.constant dense<0.000000e+00> : vector<8xf32>
    %366 = vector.multi_reduction <add>, %365, %cst_124 [1] : vector<8x128xf32> to vector<8xf32>
    %367 = vector.shape_cast %366 : vector<8xf32> to vector<8x1xf32>
    %368 = math.log %367 : vector<8x1xf32>
    %369 = vector.broadcast %368 : vector<8x1xf32> to vector<8x128xf32>
    %370 = arith.subf %364, %369 : vector<8x128xf32>
    %c0_125 = arith.constant 0 : index
    %c0_126 = arith.constant 0 : index
    %371 = vector.load %arg10[%c0_125, %c0_126] : memref<8x128xf32, #tpu.memory_space<vmem>>, vector<8x128xf32>
    tpu.vector_store %arg10[%c0_125, %c0_126], %370 {strides = array<i32>} : memref<8x128xf32, #tpu.memory_space<vmem>>, vector<8x128xf32>,
    return
  }
}

</mosaic_0001>

<llo_original>
// kernel: tpu_custom_call.1
$region0: #{tpu_custom_call.1}
  #allocation0 [shape = 'u32[]', space=smem, size = 0x4, offset = 0x4, fixed_abs, tag = 'smem constant byte address 0x4 - core index']
  #allocation1 [shape = 'u32[72,128]{1,0:T(1,128)}', space=vmem, size = 0x9000, scoped, tag = 'internal scratch']
  #allocation2 [shape = 'f32[8,32]{1,0:T(8,128)}', space=vmem, size = 0x1000, scoped, tag = 'scratch operand']
  %s0 = inlined_call_operand.vmem [shape: s32[8,1], index: 0, kind: input, shape index: {}]
  %s1 = inlined_call_operand.vmem [shape: f32[128,32], index: 1, kind: input, shape index: {}]
  %s2 = inlined_call_operand.vmem [shape: f32[32,128], index: 2, kind: input, shape index: {}]
  %s3 = inlined_call_operand.vmem [shape: f32[32,128], index: 3, kind: input, shape index: {}]
  %s4 = inlined_call_operand.vmem [shape: f32[1,128], index: 4, kind: input, shape index: {}]
  %s5 = inlined_call_operand.vmem [shape: f32[32,128], index: 5, kind: input, shape index: {}]
  %s6 = inlined_call_operand.vmem [shape: f32[32,128], index: 6, kind: input, shape index: {}]
  %s7 = inlined_call_operand.vmem [shape: f32[1,128], index: 7, kind: input, shape index: {}]
  %s8 = inlined_call_operand.vmem [shape: f32[32,128], index: 8, kind: input, shape index: {}]
  %s9 = inlined_call_operand.vmem [shape: f32[1,128], index: 9, kind: input, shape index: {}]
  %s10 = inlined_call_operand.hbm [shape: f32[8,128], index: 10, kind: output, shape index: {}]
  %s11 = sld [smem:[#allocation0]]
  $region50: #{tpu_custom_call.1} parent=0
    _
  %s13 = ssub.s32 1, %s11
  %s14 = scalar_select 0, %s13, %s11
  $region1: #{tpu_custom_call.1} parent=0
    #allocation3 [shape = 'u8[4096]{0}', space=vmem, size = 0x1000, scoped, tag = 'output window, operand 0, single buffered']
    #allocation4 [shape = 's32[1]{0}', space=sflag, size = 0x4, scoped, tag = 'scoped memory for tpu_custom_call.1']
    %15 = vsyncpa [#allocation4], 0
    // Predicated region
    $region2: #{tpu_custom_call.1} parent=1 // pred_check
      _
    $region3: #{tpu_custom_call.1} parent=1 // pred_check_branch
      %17 = sbr.rel (0) target = $region5
    $region4: #{tpu_custom_call.1} parent=1 // pred_region
      _
    $region5: #{tpu_custom_call.1} parent=1 // pred_fallthru
      _
    // Predicated region
    $region6: #{tpu_custom_call.1} parent=1 // pred_check
      _
    $region7: #{tpu_custom_call.1} parent=1 // pred_check_branch
      %19 = sbr.rel (0) target = $region9
    $region8: #{tpu_custom_call.1} parent=1 // pred_region
      _
    $region9: #{tpu_custom_call.1} parent=1 // pred_fallthru
      _
    // Predicated region
    $region10: #{tpu_custom_call.1} parent=1 // pred_check
      _
    $region11: #{tpu_custom_call.1} parent=1 // pred_check_branch
      %21 = sbr.rel (0) target = $region13
    $region12: #{tpu_custom_call.1} parent=1 // pred_region
      _
    $region13: #{tpu_custom_call.1} parent=1 // pred_fallthru
      _
    // Predicated region
    $region14: #{tpu_custom_call.1} parent=1 // pred_check
      _
    $region15: #{tpu_custom_call.1} parent=1 // pred_check_branch
      %23 = sbr.rel (0) target = $region17
    $region16: #{tpu_custom_call.1} parent=1 // pred_region
      _
    $region17: #{tpu_custom_call.1} parent=1 // pred_fallthru
      _
    // Predicated region
    $region18: #{tpu_custom_call.1} parent=1 // pred_check
      _
    $region19: #{tpu_custom_call.1} parent=1 // pred_check_branch
      %25 = sbr.rel (0) target = $region21
    $region20: #{tpu_custom_call.1} parent=1 // pred_region
      _
    $region21: #{tpu_custom_call.1} parent=1 // pred_fallthru
      _
    // Predicated region
    $region22: #{tpu_custom_call.1} parent=1 // pred_check
      _
    $region23: #{tpu_custom_call.1} parent=1 // pred_check_branch
      %27 = sbr.rel (0) target = $region25
    $region24: #{tpu_custom_call.1} parent=1 // pred_region
      _
    $region25: #{tpu_custom_call.1} parent=1 // pred_fallthru
      _
    // Predicated region
    $region26: #{tpu_custom_call.1} parent=1 // pred_check
      _
    $region27: #{tpu_custom_call.1} parent=1 // pred_check_branch
      %29 = sbr.rel (0) target = $region29
    $region28: #{tpu_custom_call.1} parent=1 // pred_region
      _
    $region29: #{tpu_custom_call.1} parent=1 // pred_fallthru
      _
    // Predicated region
    $region30: #{tpu_custom_call.1} parent=1 // pred_check
      _
    $region31: #{tpu_custom_call.1} parent=1 // pred_check_branch
      %31 = sbr.rel (0) target = $region33
    $region32: #{tpu_custom_call.1} parent=1 // pred_region
      _
    $region33: #{tpu_custom_call.1} parent=1 // pred_fallthru
      _
    // Predicated region
    $region34: #{tpu_custom_call.1} parent=1 // pred_check
      _
    $region35: #{tpu_custom_call.1} parent=1 // pred_check_branch
      %33 = sbr.rel (0) target = $region37
    $region36: #{tpu_custom_call.1} parent=1 // pred_region
      _
    $region37: #{tpu_custom_call.1} parent=1 // pred_fallthru
      _
    // Predicated region
    $region38: #{tpu_custom_call.1} parent=1 // pred_check
      _
    $region39: #{tpu_custom_call.1} parent=1 // pred_check_branch
      %35 = sbr.rel (0) target = $region41
    $region40: #{tpu_custom_call.1} parent=1 // pred_region
      _
    $region41: #{tpu_custom_call.1} parent=1 // pred_fallthru
      _
    %v36 = vld [vmem:[%s0] sm:$0xff]
    %v37 = vlaneseq
    %v38 = vand.u32 %v37, 127
    %39 = vset.pattern.permute.xlu0 0
    %40 = vperm.xlu0 %39, %v36
    %v41 = vpop.permute.xlu0 %40
    %vm42 = vcmp.eq.s32.totalorder %v38, %v41
    %v43 = vsel %vm42, 1, 0
    %v44 = vcvt.s32.f32 %v43
    %v45 = vld [vmem:[%s1] sm:$0xff]
    %v46 = vld [vmem:[%s1 + $0x8] sm:$0xff]
    %v47 = vld [vmem:[%s1 + $0x10] sm:$0xff]
    %v48 = vld [vmem:[%s1 + $0x18] sm:$0xff]
    %v49 = vld [vmem:[%s1 + $0x20] sm:$0xff]
    %v50 = vld [vmem:[%s1 + $0x28] sm:$0xff]
    %v51 = vld [vmem:[%s1 + $0x30] sm:$0xff]
    %v52 = vld [vmem:[%s1 + $0x38] sm:$0xff]
    %v53 = vld [vmem:[%s1 + $0x40] sm:$0xff]
    %v54 = vld [vmem:[%s1 + $0x48] sm:$0xff]
    %v55 = vld [vmem:[%s1 + $0x50] sm:$0xff]
    %v56 = vld [vmem:[%s1 + $0x58] sm:$0xff]
    %v57 = vld [vmem:[%s1 + $0x60] sm:$0xff]
    %v58 = vld [vmem:[%s1 + $0x68] sm:$0xff]
    %v59 = vld [vmem:[%s1 + $0x70] sm:$0xff]
    %v60 = vld [vmem:[%s1 + $0x78] sm:$0xff]
    %61 = vmatpush.msra.mxu0 %v60
    %62 = vmatpush.msra.mxu0 %v59
    %63 = vmatpush.msra.mxu0 %v58
    %64 = vmatpush.msra.mxu0 %v57
    %65 = vmatpush.msra.mxu0 %v56
    %66 = vmatpush.msra.mxu0 %v55
    %67 = vmatpush.msra.mxu0 %v54
    %68 = vmatpush.msra.mxu0 %v53
    %69 = vmatpush.msra.mxu0 %v52
    %70 = vmatpush.msra.mxu0 %v51
    %71 = vmatpush.msra.mxu0 %v50
    %72 = vmatpush.msra.mxu0 %v49
    %73 = vmatpush.msra.mxu0 %v48
    %74 = vmatpush.msra.mxu0 %v47
    %75 = vmatpush.msra.mxu0 %v46
    %76 = vmatpush.msra.mxu0 %v45
    %77 = vmatmul.f32.gmra.mxu0 %v44
    %v78 = vpop.f32.mrf.mxu0
    %v79 = vadd.f32 0.0, %v78
    %80 = vdwg.mxu0
    %v81 = vld [vmem:[%s2] sm:$0xff]
    %v82 = vld [vmem:[%s2 + $0x8] sm:$0xff]
    %v83 = vld [vmem:[%s2 + $0x10] sm:$0xff]
    %v84 = vld [vmem:[%s2 + $0x18] sm:$0xff]
    %v85 = vld [vmem:[%s4] sm:$0x1]
    %v87 = vperm.slane %v85, 0
    %vm89 = vcmask 261120
    %v91 = vsel %vm89, %v79, 0
    %93 = vmatpush.msra.mxu0 0.0
    %94 = vmatpush.msra.mxu0 0.0
    %95 = vmatpush.msra.mxu0 0.0
    %96 = vmatpush.msra.mxu0 0.0
    %97 = vmatpush.msra.mxu0 0.0
    %98 = vmatpush.msra.mxu0 0.0
    %99 = vmatpush.msra.mxu0 0.0
    %100 = vmatpush.msra.mxu0 0.0
    %101 = vmatpush.msra.mxu0 0.0
    %102 = vmatpush.msra.mxu0 0.0
    %103 = vmatpush.msra.mxu0 0.0
    %104 = vmatpush.msra.mxu0 0.0
    %105 = vmatpush.msra.mxu0 %v84
    %106 = vmatpush.msra.mxu0 %v83
    %107 = vmatpush.msra.mxu0 %v82
    %108 = vmatpush.msra.mxu0 %v81
    %109 = vmatmul.f32.gmra.mxu0 %v91
    %v110 = vpop.f32.mrf.mxu0
    %v111 = vadd.f32 %v87, %v110
    %112 = vdwg.mxu0
    %v113 = vxor.u32 %v111, 2147483648
    %v114 = vmul.f32 %v113, 1.442695
    %v115 = vpow.pop %v114
    %v116 = vadd.f32 %v115, 1.0
    %v117 = vrcp.pop %v116
    %v118 = vmul.f32 %v116, %v117
    %v119 = vsub.f32 1.0, %v118
    %v120 = vmul.f32 %v117, %v119
    %v121 = vadd.f32 %v117, %v120
    %vm122 = vweird.f32 %v116
    %vm123 = vweird.f32 %v117
    %vm124 = vmor %vm122, %vm123
    %v125 = vsel %vm124, %v117, %v121
    %v126 = vand.u32 2147483647, %v116
    %vm127 = vcmp.eq.f32.partialorder %v126, 8.507059e+37
    %v128 = vand.u32 %v116, 2147483648
    %v129 = vor.u32 1.1754944e-38, %v128
    %v130 = vsel %vm127, %v129, %v125
    %v131 = vmul.f32 1.0, %v130
    %v132 = vtanh.pop %v111
    %134 = vrot.lane.b32.xlu0 %v132, 32
    %v135 = vpop.permute.xlu0 %134
    %v137 = vmul.f32 %v131, %v135
    %v138 = vtanh.pop %v137
    %140 = vrot.lane.b32.xlu0 %v138, 64
    %v141 = vpop.permute.xlu0 %140
    %v143 = vmul.f32 %v131, %v141
    %v144 = vld [vmem:[%s5] sm:$0xff]
    %v145 = vld [vmem:[%s5 + $0x8] sm:$0xff]
    %v146 = vld [vmem:[%s5 + $0x10] sm:$0xff]
    %v147 = vld [vmem:[%s5 + $0x18] sm:$0xff]
    %v148 = vld [vmem:[%s7] sm:$0x1]
    %150 = vrot.lane.b32.xlu0 %v143, 64
    %v151 = vpop.permute.xlu0 %150
    %v152 = vsel %vm89, %v151, 0
    %154 = vmatpush.msra.mxu0 0.0
    %155 = vmatpush.msra.mxu0 0.0
    %156 = vmatpush.msra.mxu0 0.0
    %157 = vmatpush.msra.mxu0 0.0
    %158 = vmatpush.msra.mxu0 0.0
    %159 = vmatpush.msra.mxu0 0.0
    %160 = vmatpush.msra.mxu0 0.0
    %161 = vmatpush.msra.mxu0 0.0
    %162 = vmatpush.msra.mxu0 0.0
    %163 = vmatpush.msra.mxu0 0.0
    %164 = vmatpush.msra.mxu0 0.0
    %165 = vmatpush.msra.mxu0 0.0
    %166 = vmatpush.msra.mxu0 %v147
    %167 = vmatpush.msra.mxu0 %v146
    %168 = vmatpush.msra.mxu0 %v145
    %169 = vmatpush.msra.mxu0 %v144
    %170 = vmatmul.f32.gmra.mxu0 %v152
    %v171 = vpop.f32.mrf.mxu0
    %v172 = vadd.f32 %v148, %v171
    %173 = vdwg.mxu0
    %v174 = vxor.u32 %v172, 2147483648
    %v175 = vmul.f32 %v174, 1.442695
    %v176 = vpow.pop %v175
    %v177 = vadd.f32 %v176, 1.0
    %v178 = vrcp.pop %v177
    %v179 = vmul.f32 %v177, %v178
    %v180 = vsub.f32 1.0, %v179
    %v181 = vmul.f32 %v178, %v180
    %v182 = vadd.f32 %v178, %v181
    %vm183 = vweird.f32 %v177
    %vm184 = vweird.f32 %v178
    %vm185 = vmor %vm183, %vm184
    %v186 = vsel %vm185, %v178, %v182
    %v187 = vand.u32 2147483647, %v177
    %vm188 = vcmp.eq.f32.partialorder %v187, 8.507059e+37
    %v189 = vand.u32 %v177, 2147483648
    %v190 = vor.u32 1.1754944e-38, %v189
    %v191 = vsel %vm188, %v190, %v186
    %v192 = vmul.f32 1.0, %v191
    %v193 = vtanh.pop %v172
    %195 = vrot.lane.b32.xlu0 %v193, 32
    %v196 = vpop.permute.xlu0 %195
    %v198 = vmul.f32 %v192, %v196
    %v199 = vtanh.pop %v198
    %201 = vrot.lane.b32.xlu0 %v199, 64
    %v202 = vpop.permute.xlu0 %201
    %v204 = vmul.f32 %v192, %v202
    %206 = vrot.lane.b32.xlu0 %v204, 64
    %v207 = vpop.permute.xlu0 %206
    %vm209 = vcmask 253952
    %210 = vst.msk [vmem:[#allocation2] sm:$0x1] %vm209, %v207
    %v211 = vld [vmem:[%s3] sm:$0xff]
    %v212 = vld [vmem:[%s3 + $0x8] sm:$0xff]
    %v213 = vld [vmem:[%s3 + $0x10] sm:$0xff]
    %v214 = vld [vmem:[%s3 + $0x18] sm:$0xff]
    %215 = vmatpush.msra.mxu0 0.0
    %216 = vmatpush.msra.mxu0 0.0
    %217 = vmatpush.msra.mxu0 0.0
    %218 = vmatpush.msra.mxu0 0.0
    %219 = vmatpush.msra.mxu0 0.0
    %220 = vmatpush.msra.mxu0 0.0
    %221 = vmatpush.msra.mxu0 0.0
    %222 = vmatpush.msra.mxu0 0.0
    %223 = vmatpush.msra.mxu0 0.0
    %224 = vmatpush.msra.mxu0 0.0
    %225 = vmatpush.msra.mxu0 0.0
    %226 = vmatpush.msra.mxu0 0.0
    %227 = vmatpush.msra.mxu0 %v214
    %228 = vmatpush.msra.mxu0 %v213
    %229 = vmatpush.msra.mxu0 %v212
    %230 = vmatpush.msra.mxu0 %v211
    %231 = vmatmul.f32.gmra.mxu0 %v152
    %v232 = vpop.f32.mrf.mxu0
    %v233 = vadd.f32 0.0, %v232
    %234 = vdwg.mxu0
    %v236 = vrot.slane %v233, 7
    %v238 = vadd.f32 %v111, %v236
    %v239 = vxor.u32 %v238, 2147483648
    %v240 = vmul.f32 %v239, 1.442695
    %v241 = vpow.pop %v240
    %v242 = vadd.f32 %v241, 1.0
    %v243 = vrcp.pop %v242
    %v244 = vmul.f32 %v242, %v243
    %v245 = vsub.f32 1.0, %v244
    %v246 = vmul.f32 %v243, %v245
    %v247 = vadd.f32 %v243, %v246
    %vm248 = vweird.f32 %v242
    %vm249 = vweird.f32 %v243
    %vm250 = vmor %vm248, %vm249
    %v251 = vsel %vm250, %v243, %v247
    %v252 = vand.u32 2147483647, %v242
    %vm253 = vcmp.eq.f32.partialorder %v252, 8.507059e+37
    %v254 = vand.u32 %v242, 2147483648
    %v255 = vor.u32 1.1754944e-38, %v254
    %v256 = vsel %vm253, %v255, %v251
    %v257 = vmul.f32 1.0, %v256
    %v258 = vtanh.pop %v238
    %v260 = vrot.slane %v137, 7
    %261 = vrot.lane.b32.xlu0 %v260, 32
    %v262 = vpop.permute.xlu0 %261
    %v264 = vmul.f32 %v257, %v262
    %266 = vrot.lane.b32.xlu0 %v258, 32
    %v267 = vpop.permute.xlu0 %266
    %v269 = vmul.f32 %v257, %v267
    %271 = vrot.lane.b32.xlu0 %v269, 32
    %v272 = vpop.permute.xlu0 %271
    %v274 = vadd.f32 %v264, %v272
    %v275 = vtanh.pop %v274
    %277 = vrot.lane.b32.xlu0 %v275, 32
    %v278 = vpop.permute.xlu0 %277
    %v280 = vmul.f32 %v257, %v278
    %v281 = vld [vmem:[%s5] sm:$0xff]
    %v282 = vld [vmem:[%s5 + $0x8] sm:$0xff]
    %v283 = vld [vmem:[%s5 + $0x10] sm:$0xff]
    %v284 = vld [vmem:[%s5 + $0x18] sm:$0xff]
    %v285 = vld [vmem:[%s6] sm:$0xff]
    %v286 = vld [vmem:[%s6 + $0x8] sm:$0xff]
    %v287 = vld [vmem:[%s6 + $0x10] sm:$0xff]
    %v288 = vld [vmem:[%s6 + $0x18] sm:$0xff]
    %v289 = vsel %vm89, %v207, 0
    %291 = vmatpush.msra.mxu0 0.0
    %292 = vmatpush.msra.mxu0 0.0
    %293 = vmatpush.msra.mxu0 0.0
    %294 = vmatpush.msra.mxu0 0.0
    %295 = vmatpush.msra.mxu0 0.0
    %296 = vmatpush.msra.mxu0 0.0
    %297 = vmatpush.msra.mxu0 0.0
    %298 = vmatpush.msra.mxu0 0.0
    %299 = vmatpush.msra.mxu0 0.0
    %300 = vmatpush.msra.mxu0 0.0
    %301 = vmatpush.msra.mxu0 0.0
    %302 = vmatpush.msra.mxu0 0.0
    %303 = vmatpush.msra.mxu0 %v288
    %304 = vmatpush.msra.mxu0 %v287
    %305 = vmatpush.msra.mxu0 %v286
    %306 = vmatpush.msra.mxu0 %v285
    %307 = vmatmul.f32.gmra.mxu0 %v289
    %v308 = vpop.f32.mrf.mxu0
    %v309 = vadd.f32 0.0, %v308
    %310 = vdwg.mxu0
    %v312 = vrot.slane %v280, 1
    %313 = vrot.lane.b32.xlu0 %v312, 64
    %v314 = vpop.permute.xlu0 %313
    %v315 = vsel %vm89, %v314, 0
    %317 = vmatpush.msra.mxu0 0.0
    %318 = vmatpush.msra.mxu0 0.0
    %319 = vmatpush.msra.mxu0 0.0
    %320 = vmatpush.msra.mxu0 0.0
    %321 = vmatpush.msra.mxu0 0.0
    %322 = vmatpush.msra.mxu0 0.0
    %323 = vmatpush.msra.mxu0 0.0
    %324 = vmatpush.msra.mxu0 0.0
    %325 = vmatpush.msra.mxu0 0.0
    %326 = vmatpush.msra.mxu0 0.0
    %327 = vmatpush.msra.mxu0 0.0
    %328 = vmatpush.msra.mxu0 0.0
    %329 = vmatpush.msra.mxu0 %v284
    %330 = vmatpush.msra.mxu0 %v283
    %331 = vmatpush.msra.mxu0 %v282
    %332 = vmatpush.msra.mxu0 %v281
    %333 = vmatmul.f32.gmra.mxu0 %v315
    %v334 = vpop.f32.mrf.mxu0
    %v335 = vadd.f32 %v309, %v334
    %336 = vdwg.mxu0
    %v337 = vld [vmem:[%s7] sm:$0x1]
    %v338 = vadd.f32 %v335, %v337
    %v339 = vxor.u32 %v338, 2147483648
    %v340 = vmul.f32 %v339, 1.442695
    %v341 = vpow.pop %v340
    %v342 = vadd.f32 %v341, 1.0
    %v343 = vrcp.pop %v342
    %v344 = vmul.f32 %v342, %v343
    %v345 = vsub.f32 1.0, %v344
    %v346 = vmul.f32 %v343, %v345
    %v347 = vadd.f32 %v343, %v346
    %vm348 = vweird.f32 %v342
    %vm349 = vweird.f32 %v343
    %vm350 = vmor %vm348, %vm349
    %v351 = vsel %vm350, %v343, %v347
    %v352 = vand.u32 2147483647, %v342
    %vm353 = vcmp.eq.f32.partialorder %v352, 8.507059e+37
    %v354 = vand.u32 %v342, 2147483648
    %v355 = vor.u32 1.1754944e-38, %v354
    %v356 = vsel %vm353, %v355, %v351
    %v357 = vmul.f32 1.0, %v356
    %v358 = vtanh.pop %v338
    %360 = vrot.lane.b32.xlu0 %v198, 32
    %v361 = vpop.permute.xlu0 %360
    %v363 = vmul.f32 %v357, %v361
    %365 = vrot.lane.b32.xlu0 %v358, 32
    %v366 = vpop.permute.xlu0 %365
    %v368 = vmul.f32 %v357, %v366
    %370 = vrot.lane.b32.xlu0 %v368, 32
    %v371 = vpop.permute.xlu0 %370
    %v373 = vadd.f32 %v363, %v371
    %v374 = vtanh.pop %v373
    %376 = vrot.lane.b32.xlu0 %v374, 32
    %v377 = vpop.permute.xlu0 %376
    %v379 = vmul.f32 %v357, %v377
    %381 = vrot.lane.b32.xlu0 %v379, 64
    %v382 = vpop.permute.xlu0 %381
    %384 = vst.msk [vmem:[#allocation2 + $0x1] sm:$0x1] %vm209, %v382
    %v385 = vld [vmem:[%s3] sm:$0xff]
    %v386 = vld [vmem:[%s3 + $0x8] sm:$0xff]
    %v387 = vld [vmem:[%s3 + $0x10] sm:$0xff]
    %v388 = vld [vmem:[%s3 + $0x18] sm:$0xff]
    %389 = vmatpush.msra.mxu0 0.0
    %390 = vmatpush.msra.mxu0 0.0
    %391 = vmatpush.msra.mxu0 0.0
    %392 = vmatpush.msra.mxu0 0.0
    %393 = vmatpush.msra.mxu0 0.0
    %394 = vmatpush.msra.mxu0 0.0
    %395 = vmatpush.msra.mxu0 0.0
    %396 = vmatpush.msra.mxu0 0.0
    %397 = vmatpush.msra.mxu0 0.0
    %398 = vmatpush.msra.mxu0 0.0
    %399 = vmatpush.msra.mxu0 0.0
    %400 = vmatpush.msra.mxu0 0.0
    %401 = vmatpush.msra.mxu0 %v388
    %402 = vmatpush.msra.mxu0 %v387
    %403 = vmatpush.msra.mxu0 %v386
    %404 = vmatpush.msra.mxu0 %v385
    %405 = vmatmul.f32.gmra.mxu0 %v315
    %v406 = vpop.f32.mrf.mxu0
    %v407 = vadd.f32 0.0, %v406
    %408 = vdwg.mxu0
    %v410 = vrot.slane %v407, 6
    %v412 = vadd.f32 %v111, %v410
    %v413 = vxor.u32 %v412, 2147483648
    %v414 = vmul.f32 %v413, 1.442695
    %v415 = vpow.pop %v414
    %v416 = vadd.f32 %v415, 1.0
    %v417 = vrcp.pop %v416
    %v418 = vmul.f32 %v416, %v417
    %v419 = vsub.f32 1.0, %v418
    %v420 = vmul.f32 %v417, %v419
    %v421 = vadd.f32 %v417, %v420
    %vm422 = vweird.f32 %v416
    %vm423 = vweird.f32 %v417
    %vm424 = vmor %vm422, %vm423
    %v425 = vsel %vm424, %v417, %v421
    %v426 = vand.u32 2147483647, %v416
    %vm427 = vcmp.eq.f32.partialorder %v426, 8.507059e+37
    %v428 = vand.u32 %v416, 2147483648
    %v429 = vor.u32 1.1754944e-38, %v428
    %v430 = vsel %vm427, %v429, %v425
    %v431 = vmul.f32 1.0, %v430
    %v432 = vtanh.pop %v412
    %v434 = vrot.slane %v274, 7
    %v436 = vmul.f32 %v431, %v434
    %438 = vrot.lane.b32.xlu0 %v432, 32
    %v439 = vpop.permute.xlu0 %438
    %v441 = vmul.f32 %v431, %v439
    %443 = vrot.lane.b32.xlu0 %v441, 32
    %v444 = vpop.permute.xlu0 %443
    %v446 = vadd.f32 %v436, %v444
    %v447 = vtanh.pop %v446
    %449 = vrot.lane.b32.xlu0 %v447, 32
    %v450 = vpop.permute.xlu0 %449
    %v452 = vmul.f32 %v431, %v450
    %v453 = vld [vmem:[%s5] sm:$0xff]
    %v454 = vld [vmem:[%s5 + $0x8] sm:$0xff]
    %v455 = vld [vmem:[%s5 + $0x10] sm:$0xff]
    %v456 = vld [vmem:[%s5 + $0x18] sm:$0xff]
    %v457 = vld [vmem:[%s6] sm:$0xff]
    %v458 = vld [vmem:[%s6 + $0x8] sm:$0xff]
    %v459 = vld [vmem:[%s6 + $0x10] sm:$0xff]
    %v460 = vld [vmem:[%s6 + $0x18] sm:$0xff]
    %v461 = vsel %vm89, %v382, 0
    %463 = vmatpush.msra.mxu0 0.0
    %464 = vmatpush.msra.mxu0 0.0
    %465 = vmatpush.msra.mxu0 0.0
    %466 = vmatpush.msra.mxu0 0.0
    %467 = vmatpush.msra.mxu0 0.0
    %468 = vmatpush.msra.mxu0 0.0
    %469 = vmatpush.msra.mxu0 0.0
    %470 = vmatpush.msra.mxu0 0.0
    %471 = vmatpush.msra.mxu0 0.0
    %472 = vmatpush.msra.mxu0 0.0
    %473 = vmatpush.msra.mxu0 0.0
    %474 = vmatpush.msra.mxu0 0.0
    %475 = vmatpush.msra.mxu0 %v460
    %476 = vmatpush.msra.mxu0 %v459
    %477 = vmatpush.msra.mxu0 %v458
    %478 = vmatpush.msra.mxu0 %v457
    %479 = vmatmul.f32.gmra.mxu0 %v461
    %v480 = vpop.f32.mrf.mxu0
    %v481 = vadd.f32 0.0, %v480
    %482 = vdwg.mxu0
    %v484 = vrot.slane %v452, 2
    %485 = vrot.lane.b32.xlu0 %v484, 64
    %v486 = vpop.permute.xlu0 %485
    %v487 = vsel %vm89, %v486, 0
    %489 = vmatpush.msra.mxu0 0.0
    %490 = vmatpush.msra.mxu0 0.0
    %491 = vmatpush.msra.mxu0 0.0
    %492 = vmatpush.msra.mxu0 0.0
    %493 = vmatpush.msra.mxu0 0.0
    %494 = vmatpush.msra.mxu0 0.0
    %495 = vmatpush.msra.mxu0 0.0
    %496 = vmatpush.msra.mxu0 0.0
    %497 = vmatpush.msra.mxu0 0.0
    %498 = vmatpush.msra.mxu0 0.0
    %499 = vmatpush.msra.mxu0 0.0
    %500 = vmatpush.msra.mxu0 0.0
    %501 = vmatpush.msra.mxu0 %v456
    %502 = vmatpush.msra.mxu0 %v455
    %503 = vmatpush.msra.mxu0 %v454
    %504 = vmatpush.msra.mxu0 %v453
    %505 = vmatmul.f32.gmra.mxu0 %v487
    %v506 = vpop.f32.mrf.mxu0
    %v507 = vadd.f32 %v481, %v506
    %508 = vdwg.mxu0
    %v509 = vld [vmem:[%s7] sm:$0x1]
    %v510 = vadd.f32 %v507, %v509
    %v511 = vxor.u32 %v510, 2147483648
    %v512 = vmul.f32 %v511, 1.442695
    %v513 = vpow.pop %v512
    %v514 = vadd.f32 %v513, 1.0
    %v515 = vrcp.pop %v514
    %v516 = vmul.f32 %v514, %v515
    %v517 = vsub.f32 1.0, %v516
    %v518 = vmul.f32 %v515, %v517
    %v519 = vadd.f32 %v515, %v518
    %vm520 = vweird.f32 %v514
    %vm521 = vweird.f32 %v515
    %vm522 = vmor %vm520, %vm521
    %v523 = vsel %vm522, %v515, %v519
    %v524 = vand.u32 2147483647, %v514
    %vm525 = vcmp.eq.f32.partialorder %v524, 8.507059e+37
    %v526 = vand.u32 %v514, 2147483648
    %v527 = vor.u32 1.1754944e-38, %v526
    %v528 = vsel %vm525, %v527, %v523
    %v529 = vmul.f32 1.0, %v528
    %v530 = vtanh.pop %v510
    %v531 = vmul.f32 %v529, %v373
    %533 = vrot.lane.b32.xlu0 %v530, 32
    %v534 = vpop.permute.xlu0 %533
    %v536 = vmul.f32 %v529, %v534
    %538 = vrot.lane.b32.xlu0 %v536, 32
    %v539 = vpop.permute.xlu0 %538
    %v541 = vadd.f32 %v531, %v539
    %v542 = vtanh.pop %v541
    %544 = vrot.lane.b32.xlu0 %v542, 32
    %v545 = vpop.permute.xlu0 %544
    %v547 = vmul.f32 %v529, %v545
    %549 = vrot.lane.b32.xlu0 %v547, 64
    %v550 = vpop.permute.xlu0 %549
    %552 = vst.msk [vmem:[#allocation2 + $0x2] sm:$0x1] %vm209, %v550
    %v553 = vld [vmem:[%s3] sm:$0xff]
    %v554 = vld [vmem:[%s3 + $0x8] sm:$0xff]
    %v555 = vld [vmem:[%s3 + $0x10] sm:$0xff]
    %v556 = vld [vmem:[%s3 + $0x18] sm:$0xff]
    %557 = vmatpush.msra.mxu0 0.0
    %558 = vmatpush.msra.mxu0 0.0
    %559 = vmatpush.msra.mxu0 0.0
    %560 = vmatpush.msra.mxu0 0.0
    %561 = vmatpush.msra.mxu0 0.0
    %562 = vmatpush.msra.mxu0 0.0
    %563 = vmatpush.msra.mxu0 0.0
    %564 = vmatpush.msra.mxu0 0.0
    %565 = vmatpush.msra.mxu0 0.0
    %566 = vmatpush.msra.mxu0 0.0
    %567 = vmatpush.msra.mxu0 0.0
    %568 = vmatpush.msra.mxu0 0.0
    %569 = vmatpush.msra.mxu0 %v556
    %570 = vmatpush.msra.mxu0 %v555
    %571 = vmatpush.msra.mxu0 %v554
    %572 = vmatpush.msra.mxu0 %v553
    %573 = vmatmul.f32.gmra.mxu0 %v487
    %v574 = vpop.f32.mrf.mxu0
    %v575 = vadd.f32 0.0, %v574
    %576 = vdwg.mxu0
    %v578 = vrot.slane %v575, 5
    %v580 = vadd.f32 %v111, %v578
    %v581 = vxor.u32 %v580, 2147483648
    %v582 = vmul.f32 %v581, 1.442695
    %v583 = vpow.pop %v582
    %v584 = vadd.f32 %v583, 1.0
    %v585 = vrcp.pop %v584
    %v586 = vmul.f32 %v584, %v585
    %v587 = vsub.f32 1.0, %v586
    %v588 = vmul.f32 %v585, %v587
    %v589 = vadd.f32 %v585, %v588
    %vm590 = vweird.f32 %v584
    %vm591 = vweird.f32 %v585
    %vm592 = vmor %vm590, %vm591
    %v593 = vsel %vm592, %v585, %v589
    %v594 = vand.u32 2147483647, %v584
    %vm595 = vcmp.eq.f32.partialorder %v594, 8.507059e+37
    %v596 = vand.u32 %v584, 2147483648
    %v597 = vor.u32 1.1754944e-38, %v596
    %v598 = vsel %vm595, %v597, %v593
    %v599 = vmul.f32 1.0, %v598
    %v600 = vtanh.pop %v580
    %v602 = vrot.slane %v446, 7
    %v604 = vmul.f32 %v599, %v602
    %606 = vrot.lane.b32.xlu0 %v600, 32
    %v607 = vpop.permute.xlu0 %606
    %v609 = vmul.f32 %v599, %v607
    %611 = vrot.lane.b32.xlu0 %v609, 32
    %v612 = vpop.permute.xlu0 %611
    %v614 = vadd.f32 %v604, %v612
    %v615 = vtanh.pop %v614
    %617 = vrot.lane.b32.xlu0 %v615, 32
    %v618 = vpop.permute.xlu0 %617
    %v620 = vmul.f32 %v599, %v618
    %v621 = vld [vmem:[%s5] sm:$0xff]
    %v622 = vld [vmem:[%s5 + $0x8] sm:$0xff]
    %v623 = vld [vmem:[%s5 + $0x10] sm:$0xff]
    %v624 = vld [vmem:[%s5 + $0x18] sm:$0xff]
    %v625 = vld [vmem:[%s6] sm:$0xff]
    %v626 = vld [vmem:[%s6 + $0x8] sm:$0xff]
    %v627 = vld [vmem:[%s6 + $0x10] sm:$0xff]
    %v628 = vld [vmem:[%s6 + $0x18] sm:$0xff]
    %v629 = vsel %vm89, %v550, 0
    %631 = vmatpush.msra.mxu0 0.0
    %632 = vmatpush.msra.mxu0 0.0
    %633 = vmatpush.msra.mxu0 0.0
    %634 = vmatpush.msra.mxu0 0.0
    %635 = vmatpush.msra.mxu0 0.0
    %636 = vmatpush.msra.mxu0 0.0
    %637 = vmatpush.msra.mxu0 0.0
    %638 = vmatpush.msra.mxu0 0.0
    %639 = vmatpush.msra.mxu0 0.0
    %640 = vmatpush.msra.mxu0 0.0
    %641 = vmatpush.msra.mxu0 0.0
    %642 = vmatpush.msra.mxu0 0.0
    %643 = vmatpush.msra.mxu0 %v628
    %644 = vmatpush.msra.mxu0 %v627
    %645 = vmatpush.msra.mxu0 %v626
    %646 = vmatpush.msra.mxu0 %v625
    %647 = vmatmul.f32.gmra.mxu0 %v629
    %v648 = vpop.f32.mrf.mxu0
    %v649 = vadd.f32 0.0, %v648
    %650 = vdwg.mxu0
    %v652 = vrot.slane %v620, 3
    %653 = vrot.lane.b32.xlu0 %v652, 64
    %v654 = vpop.permute.xlu0 %653
    %v655 = vsel %vm89, %v654, 0
    %657 = vmatpush.msra.mxu0 0.0
    %658 = vmatpush.msra.mxu0 0.0
    %659 = vmatpush.msra.mxu0 0.0
    %660 = vmatpush.msra.mxu0 0.0
    %661 = vmatpush.msra.mxu0 0.0
    %662 = vmatpush.msra.mxu0 0.0
    %663 = vmatpush.msra.mxu0 0.0
    %664 = vmatpush.msra.mxu0 0.0
    %665 = vmatpush.msra.mxu0 0.0
    %666 = vmatpush.msra.mxu0 0.0
    %667 = vmatpush.msra.mxu0 0.0
    %668 = vmatpush.msra.mxu0 0.0
    %669 = vmatpush.msra.mxu0 %v624
    %670 = vmatpush.msra.mxu0 %v623
    %671 = vmatpush.msra.mxu0 %v622
    %672 = vmatpush.msra.mxu0 %v621
    %673 = vmatmul.f32.gmra.mxu0 %v655
    %v674 = vpop.f32.mrf.mxu0
    %v675 = vadd.f32 %v649, %v674
    %676 = vdwg.mxu0
    %v677 = vld [vmem:[%s7] sm:$0x1]
    %v678 = vadd.f32 %v675, %v677
    %v679 = vxor.u32 %v678, 2147483648
    %v680 = vmul.f32 %v679, 1.442695
    %v681 = vpow.pop %v680
    %v682 = vadd.f32 %v681, 1.0
    %v683 = vrcp.pop %v682
    %v684 = vmul.f32 %v682, %v683
    %v685 = vsub.f32 1.0, %v684
    %v686 = vmul.f32 %v683, %v685
    %v687 = vadd.f32 %v683, %v686
    %vm688 = vweird.f32 %v682
    %vm689 = vweird.f32 %v683
    %vm690 = vmor %vm688, %vm689
    %v691 = vsel %vm690, %v683, %v687
    %v692 = vand.u32 2147483647, %v682
    %vm693 = vcmp.eq.f32.partialorder %v692, 8.507059e+37
    %v694 = vand.u32 %v682, 2147483648
    %v695 = vor.u32 1.1754944e-38, %v694
    %v696 = vsel %vm693, %v695, %v691
    %v697 = vmul.f32 1.0, %v696
    %v698 = vtanh.pop %v678
    %v699 = vmul.f32 %v697, %v541
    %701 = vrot.lane.b32.xlu0 %v698, 32
    %v702 = vpop.permute.xlu0 %701
    %v704 = vmul.f32 %v697, %v702
    %706 = vrot.lane.b32.xlu0 %v704, 32
    %v707 = vpop.permute.xlu0 %706
    %v709 = vadd.f32 %v699, %v707
    %v710 = vtanh.pop %v709
    %712 = vrot.lane.b32.xlu0 %v710, 32
    %v713 = vpop.permute.xlu0 %712
    %v715 = vmul.f32 %v697, %v713
    %717 = vrot.lane.b32.xlu0 %v715, 64
    %v718 = vpop.permute.xlu0 %717
    %720 = vst.msk [vmem:[#allocation2 + $0x3] sm:$0x1] %vm209, %v718
    %v721 = vld [vmem:[%s3] sm:$0xff]
    %v722 = vld [vmem:[%s3 + $0x8] sm:$0xff]
    %v723 = vld [vmem:[%s3 + $0x10] sm:$0xff]
    %v724 = vld [vmem:[%s3 + $0x18] sm:$0xff]
    %725 = vmatpush.msra.mxu0 0.0
    %726 = vmatpush.msra.mxu0 0.0
    %727 = vmatpush.msra.mxu0 0.0
    %728 = vmatpush.msra.mxu0 0.0
    %729 = vmatpush.msra.mxu0 0.0
    %730 = vmatpush.msra.mxu0 0.0
    %731 = vmatpush.msra.mxu0 0.0
    %732 = vmatpush.msra.mxu0 0.0
    %733 = vmatpush.msra.mxu0 0.0
    %734 = vmatpush.msra.mxu0 0.0
    %735 = vmatpush.msra.mxu0 0.0
    %736 = vmatpush.msra.mxu0 0.0
    %737 = vmatpush.msra.mxu0 %v724
    %738 = vmatpush.msra.mxu0 %v723
    %739 = vmatpush.msra.mxu0 %v722
    %740 = vmatpush.msra.mxu0 %v721
    %741 = vmatmul.f32.gmra.mxu0 %v655
    %v742 = vpop.f32.mrf.mxu0
    %v743 = vadd.f32 0.0, %v742
    %744 = vdwg.mxu0
    %v746 = vrot.slane %v743, 4
    %v748 = vadd.f32 %v111, %v746
    %v749 = vxor.u32 %v748, 2147483648
    %v750 = vmul.f32 %v749, 1.442695
    %v751 = vpow.pop %v750
    %v752 = vadd.f32 %v751, 1.0
    %v753 = vrcp.pop %v752
    %v754 = vmul.f32 %v752, %v753
    %v755 = vsub.f32 1.0, %v754
    %v756 = vmul.f32 %v753, %v755
    %v757 = vadd.f32 %v753, %v756
    %vm758 = vweird.f32 %v752
    %vm759 = vweird.f32 %v753
    %vm760 = vmor %vm758, %vm759
    %v761 = vsel %vm760, %v753, %v757
    %v762 = vand.u32 2147483647, %v752
    %vm763 = vcmp.eq.f32.partialorder %v762, 8.507059e+37
    %v764 = vand.u32 %v752, 2147483648
    %v765 = vor.u32 1.1754944e-38, %v764
    %v766 = vsel %vm763, %v765, %v761
    %v767 = vmul.f32 1.0, %v766
    %v768 = vtanh.pop %v748
    %v770 = vrot.slane %v614, 7
    %v772 = vmul.f32 %v767, %v770
    %774 = vrot.lane.b32.xlu0 %v768, 32
    %v775 = vpop.permute.xlu0 %774
    %v777 = vmul.f32 %v767, %v775
    %779 = vrot.lane.b32.xlu0 %v777, 32
    %v780 = vpop.permute.xlu0 %779
    %v782 = vadd.f32 %v772, %v780
    %v783 = vtanh.pop %v782
    %785 = vrot.lane.b32.xlu0 %v783, 32
    %v786 = vpop.permute.xlu0 %785
    %v788 = vmul.f32 %v767, %v786
    %v789 = vld [vmem:[%s5] sm:$0xff]
    %v790 = vld [vmem:[%s5 + $0x8] sm:$0xff]
    %v791 = vld [vmem:[%s5 + $0x10] sm:$0xff]
    %v792 = vld [vmem:[%s5 + $0x18] sm:$0xff]
    %v793 = vld [vmem:[%s6] sm:$0xff]
    %v794 = vld [vmem:[%s6 + $0x8] sm:$0xff]
    %v795 = vld [vmem:[%s6 + $0x10] sm:$0xff]
    %v796 = vld [vmem:[%s6 + $0x18] sm:$0xff]
    %v797 = vsel %vm89, %v718, 0
    %799 = vmatpush.msra.mxu0 0.0
    %800 = vmatpush.msra.mxu0 0.0
    %801 = vmatpush.msra.mxu0 0.0
    %802 = vmatpush.msra.mxu0 0.0
    %803 = vmatpush.msra.mxu0 0.0
    %804 = vmatpush.msra.mxu0 0.0
    %805 = vmatpush.msra.mxu0 0.0
    %806 = vmatpush.msra.mxu0 0.0
    %807 = vmatpush.msra.mxu0 0.0
    %808 = vmatpush.msra.mxu0 0.0
    %809 = vmatpush.msra.mxu0 0.0
    %810 = vmatpush.msra.mxu0 0.0
    %811 = vmatpush.msra.mxu0 %v796
    %812 = vmatpush.msra.mxu0 %v795
    %813 = vmatpush.msra.mxu0 %v794
    %814 = vmatpush.msra.mxu0 %v793
    %815 = vmatmul.f32.gmra.mxu0 %v797
    %v816 = vpop.f32.mrf.mxu0
    %v817 = vadd.f32 0.0, %v816
    %818 = vdwg.mxu0
    %v820 = vrot.slane %v788, 4
    %821 = vrot.lane.b32.xlu0 %v820, 64
    %v822 = vpop.permute.xlu0 %821
    %v823 = vsel %vm89, %v822, 0
    %825 = vmatpush.msra.mxu0 0.0
    %826 = vmatpush.msra.mxu0 0.0
    %827 = vmatpush.msra.mxu0 0.0
    %828 = vmatpush.msra.mxu0 0.0
    %829 = vmatpush.msra.mxu0 0.0
    %830 = vmatpush.msra.mxu0 0.0
    %831 = vmatpush.msra.mxu0 0.0
    %832 = vmatpush.msra.mxu0 0.0
    %833 = vmatpush.msra.mxu0 0.0
    %834 = vmatpush.msra.mxu0 0.0
    %835 = vmatpush.msra.mxu0 0.0
    %836 = vmatpush.msra.mxu0 0.0
    %837 = vmatpush.msra.mxu0 %v792
    %838 = vmatpush.msra.mxu0 %v791
    %839 = vmatpush.msra.mxu0 %v790
    %840 = vmatpush.msra.mxu0 %v789
    %841 = vmatmul.f32.gmra.mxu0 %v823
    %v842 = vpop.f32.mrf.mxu0
    %v843 = vadd.f32 %v817, %v842
    %844 = vdwg.mxu0
    %v845 = vld [vmem:[%s7] sm:$0x1]
    %v846 = vadd.f32 %v843, %v845
    %v847 = vxor.u32 %v846, 2147483648
    %v848 = vmul.f32 %v847, 1.442695
    %v849 = vpow.pop %v848
    %v850 = vadd.f32 %v849, 1.0
    %v851 = vrcp.pop %v850
    %v852 = vmul.f32 %v850, %v851
    %v853 = vsub.f32 1.0, %v852
    %v854 = vmul.f32 %v851, %v853
    %v855 = vadd.f32 %v851, %v854
    %vm856 = vweird.f32 %v850
    %vm857 = vweird.f32 %v851
    %vm858 = vmor %vm856, %vm857
    %v859 = vsel %vm858, %v851, %v855
    %v860 = vand.u32 2147483647, %v850
    %vm861 = vcmp.eq.f32.partialorder %v860, 8.507059e+37
    %v862 = vand.u32 %v850, 2147483648
    %v863 = vor.u32 1.1754944e-38, %v862
    %v864 = vsel %vm861, %v863, %v859
    %v865 = vmul.f32 1.0, %v864
    %v866 = vtanh.pop %v846
    %v867 = vmul.f32 %v865, %v709
    %869 = vrot.lane.b32.xlu0 %v866, 32
    %v870 = vpop.permute.xlu0 %869
    %v872 = vmul.f32 %v865, %v870
    %874 = vrot.lane.b32.xlu0 %v872, 32
    %v875 = vpop.permute.xlu0 %874
    %v877 = vadd.f32 %v867, %v875
    %v878 = vtanh.pop %v877
    %880 = vrot.lane.b32.xlu0 %v878, 32
    %v881 = vpop.permute.xlu0 %880
    %v883 = vmul.f32 %v865, %v881
    %885 = vrot.lane.b32.xlu0 %v883, 64
    %v886 = vpop.permute.xlu0 %885
    %888 = vst.msk [vmem:[#allocation2 + $0x4] sm:$0x1] %vm209, %v886
    %v889 = vld [vmem:[%s3] sm:$0xff]
    %v890 = vld [vmem:[%s3 + $0x8] sm:$0xff]
    %v891 = vld [vmem:[%s3 + $0x10] sm:$0xff]
    %v892 = vld [vmem:[%s3 + $0x18] sm:$0xff]
    %893 = vmatpush.msra.mxu0 0.0
    %894 = vmatpush.msra.mxu0 0.0
    %895 = vmatpush.msra.mxu0 0.0
    %896 = vmatpush.msra.mxu0 0.0
    %897 = vmatpush.msra.mxu0 0.0
    %898 = vmatpush.msra.mxu0 0.0
    %899 = vmatpush.msra.mxu0 0.0
    %900 = vmatpush.msra.mxu0 0.0
    %901 = vmatpush.msra.mxu0 0.0
    %902 = vmatpush.msra.mxu0 0.0
    %903 = vmatpush.msra.mxu0 0.0
    %904 = vmatpush.msra.mxu0 0.0
    %905 = vmatpush.msra.mxu0 %v892
    %906 = vmatpush.msra.mxu0 %v891
    %907 = vmatpush.msra.mxu0 %v890
    %908 = vmatpush.msra.mxu0 %v889
    %909 = vmatmul.f32.gmra.mxu0 %v823
    %v910 = vpop.f32.mrf.mxu0
    %v911 = vadd.f32 0.0, %v910
    %912 = vdwg.mxu0
    %v914 = vrot.slane %v911, 3
    %v916 = vadd.f32 %v111, %v914
    %v917 = vxor.u32 %v916, 2147483648
    %v918 = vmul.f32 %v917, 1.442695
    %v919 = vpow.pop %v918
    %v920 = vadd.f32 %v919, 1.0
    %v921 = vrcp.pop %v920
    %v922 = vmul.f32 %v920, %v921
    %v923 = vsub.f32 1.0, %v922
    %v924 = vmul.f32 %v921, %v923
    %v925 = vadd.f32 %v921, %v924
    %vm926 = vweird.f32 %v920
    %vm927 = vweird.f32 %v921
    %vm928 = vmor %vm926, %vm927
    %v929 = vsel %vm928, %v921, %v925
    %v930 = vand.u32 2147483647, %v920
    %vm931 = vcmp.eq.f32.partialorder %v930, 8.507059e+37
    %v932 = vand.u32 %v920, 2147483648
    %v933 = vor.u32 1.1754944e-38, %v932
    %v934 = vsel %vm931, %v933, %v929
    %v935 = vmul.f32 1.0, %v934
    %v936 = vtanh.pop %v916
    %v938 = vrot.slane %v782, 7
    %v940 = vmul.f32 %v935, %v938
    %942 = vrot.lane.b32.xlu0 %v936, 32
    %v943 = vpop.permute.xlu0 %942
    %v945 = vmul.f32 %v935, %v943
    %947 = vrot.lane.b32.xlu0 %v945, 32
    %v948 = vpop.permute.xlu0 %947
    %v950 = vadd.f32 %v940, %v948
    %v951 = vtanh.pop %v950
    %953 = vrot.lane.b32.xlu0 %v951, 32
    %v954 = vpop.permute.xlu0 %953
    %v956 = vmul.f32 %v935, %v954
    %v957 = vld [vmem:[%s5] sm:$0xff]
    %v958 = vld [vmem:[%s5 + $0x8] sm:$0xff]
    %v959 = vld [vmem:[%s5 + $0x10] sm:$0xff]
    %v960 = vld [vmem:[%s5 + $0x18] sm:$0xff]
    %v961 = vld [vmem:[%s6] sm:$0xff]
    %v962 = vld [vmem:[%s6 + $0x8] sm:$0xff]
    %v963 = vld [vmem:[%s6 + $0x10] sm:$0xff]
    %v964 = vld [vmem:[%s6 + $0x18] sm:$0xff]
    %v965 = vsel %vm89, %v886, 0
    %967 = vmatpush.msra.mxu0 0.0
    %968 = vmatpush.msra.mxu0 0.0
    %969 = vmatpush.msra.mxu0 0.0
    %970 = vmatpush.msra.mxu0 0.0
    %971 = vmatpush.msra.mxu0 0.0
    %972 = vmatpush.msra.mxu0 0.0
    %973 = vmatpush.msra.mxu0 0.0
    %974 = vmatpush.msra.mxu0 0.0
    %975 = vmatpush.msra.mxu0 0.0
    %976 = vmatpush.msra.mxu0 0.0
    %977 = vmatpush.msra.mxu0 0.0
    %978 = vmatpush.msra.mxu0 0.0
    %979 = vmatpush.msra.mxu0 %v964
    %980 = vmatpush.msra.mxu0 %v963
    %981 = vmatpush.msra.mxu0 %v962
    %982 = vmatpush.msra.mxu0 %v961
    %983 = vmatmul.f32.gmra.mxu0 %v965
    %v984 = vpop.f32.mrf.mxu0
    %v985 = vadd.f32 0.0, %v984
    %986 = vdwg.mxu0
    %v988 = vrot.slane %v956, 5
    %989 = vrot.lane.b32.xlu0 %v988, 64
    %v990 = vpop.permute.xlu0 %989
    %v991 = vsel %vm89, %v990, 0
    %993 = vmatpush.msra.mxu0 0.0
    %994 = vmatpush.msra.mxu0 0.0
    %995 = vmatpush.msra.mxu0 0.0
    %996 = vmatpush.msra.mxu0 0.0
    %997 = vmatpush.msra.mxu0 0.0
    %998 = vmatpush.msra.mxu0 0.0
    %999 = vmatpush.msra.mxu0 0.0
    %1000 = vmatpush.msra.mxu0 0.0
    %1001 = vmatpush.msra.mxu0 0.0
    %1002 = vmatpush.msra.mxu0 0.0
    %1003 = vmatpush.msra.mxu0 0.0
    %1004 = vmatpush.msra.mxu0 0.0
    %1005 = vmatpush.msra.mxu0 %v960
    %1006 = vmatpush.msra.mxu0 %v959
    %1007 = vmatpush.msra.mxu0 %v958
    %1008 = vmatpush.msra.mxu0 %v957
    %1009 = vmatmul.f32.gmra.mxu0 %v991
    %v1010 = vpop.f32.mrf.mxu0
    %v1011 = vadd.f32 %v985, %v1010
    %1012 = vdwg.mxu0
    %v1013 = vld [vmem:[%s7] sm:$0x1]
    %v1014 = vadd.f32 %v1011, %v1013
    %v1015 = vxor.u32 %v1014, 2147483648
    %v1016 = vmul.f32 %v1015, 1.442695
    %v1017 = vpow.pop %v1016
    %v1018 = vadd.f32 %v1017, 1.0
    %v1019 = vrcp.pop %v1018
    %v1020 = vmul.f32 %v1018, %v1019
    %v1021 = vsub.f32 1.0, %v1020
    %v1022 = vmul.f32 %v1019, %v1021
    %v1023 = vadd.f32 %v1019, %v1022
    %vm1024 = vweird.f32 %v1018
    %vm1025 = vweird.f32 %v1019
    %vm1026 = vmor %vm1024, %vm1025
    %v1027 = vsel %vm1026, %v1019, %v1023
    %v1028 = vand.u32 2147483647, %v1018
    %vm1029 = vcmp.eq.f32.partialorder %v1028, 8.507059e+37
    %v1030 = vand.u32 %v1018, 2147483648
    %v1031 = vor.u32 1.1754944e-38, %v1030
    %v1032 = vsel %vm1029, %v1031, %v1027
    %v1033 = vmul.f32 1.0, %v1032
    %v1034 = vtanh.pop %v1014
    %v1035 = vmul.f32 %v1033, %v877
    %1037 = vrot.lane.b32.xlu0 %v1034, 32
    %v1038 = vpop.permute.xlu0 %1037
    %v1040 = vmul.f32 %v1033, %v1038
    %1042 = vrot.lane.b32.xlu0 %v1040, 32
    %v1043 = vpop.permute.xlu0 %1042
    %v1045 = vadd.f32 %v1035, %v1043
    %v1046 = vtanh.pop %v1045
    %1048 = vrot.lane.b32.xlu0 %v1046, 32
    %v1049 = vpop.permute.xlu0 %1048
    %v1051 = vmul.f32 %v1033, %v1049
    %1053 = vrot.lane.b32.xlu0 %v1051, 64
    %v1054 = vpop.permute.xlu0 %1053
    %1056 = vst.msk [vmem:[#allocation2 + $0x5] sm:$0x1] %vm209, %v1054
    %v1057 = vld [vmem:[%s3] sm:$0xff]
    %v1058 = vld [vmem:[%s3 + $0x8] sm:$0xff]
    %v1059 = vld [vmem:[%s3 + $0x10] sm:$0xff]
    %v1060 = vld [vmem:[%s3 + $0x18] sm:$0xff]
    %1061 = vmatpush.msra.mxu0 0.0
    %1062 = vmatpush.msra.mxu0 0.0
    %1063 = vmatpush.msra.mxu0 0.0
    %1064 = vmatpush.msra.mxu0 0.0
    %1065 = vmatpush.msra.mxu0 0.0
    %1066 = vmatpush.msra.mxu0 0.0
    %1067 = vmatpush.msra.mxu0 0.0
    %1068 = vmatpush.msra.mxu0 0.0
    %1069 = vmatpush.msra.mxu0 0.0
    %1070 = vmatpush.msra.mxu0 0.0
    %1071 = vmatpush.msra.mxu0 0.0
    %1072 = vmatpush.msra.mxu0 0.0
    %1073 = vmatpush.msra.mxu0 %v1060
    %1074 = vmatpush.msra.mxu0 %v1059
    %1075 = vmatpush.msra.mxu0 %v1058
    %1076 = vmatpush.msra.mxu0 %v1057
    %1077 = vmatmul.f32.gmra.mxu0 %v991
    %v1078 = vpop.f32.mrf.mxu0
    %v1079 = vadd.f32 0.0, %v1078
    %1080 = vdwg.mxu0
    %v1082 = vrot.slane %v1079, 2
    %v1084 = vadd.f32 %v111, %v1082
    %v1085 = vxor.u32 %v1084, 2147483648
    %v1086 = vmul.f32 %v1085, 1.442695
    %v1087 = vpow.pop %v1086
    %v1088 = vadd.f32 %v1087, 1.0
    %v1089 = vrcp.pop %v1088
    %v1090 = vmul.f32 %v1088, %v1089
    %v1091 = vsub.f32 1.0, %v1090
    %v1092 = vmul.f32 %v1089, %v1091
    %v1093 = vadd.f32 %v1089, %v1092
    %vm1094 = vweird.f32 %v1088
    %vm1095 = vweird.f32 %v1089
    %vm1096 = vmor %vm1094, %vm1095
    %v1097 = vsel %vm1096, %v1089, %v1093
    %v1098 = vand.u32 2147483647, %v1088
    %vm1099 = vcmp.eq.f32.partialorder %v1098, 8.507059e+37
    %v1100 = vand.u32 %v1088, 2147483648
    %v1101 = vor.u32 1.1754944e-38, %v1100
    %v1102 = vsel %vm1099, %v1101, %v1097
    %v1103 = vmul.f32 1.0, %v1102
    %v1104 = vtanh.pop %v1084
    %v1106 = vrot.slane %v950, 7
    %v1108 = vmul.f32 %v1103, %v1106
    %1110 = vrot.lane.b32.xlu0 %v1104, 32
    %v1111 = vpop.permute.xlu0 %1110
    %v1113 = vmul.f32 %v1103, %v1111
    %1115 = vrot.lane.b32.xlu0 %v1113, 32
    %v1116 = vpop.permute.xlu0 %1115
    %v1118 = vadd.f32 %v1108, %v1116
    %v1119 = vtanh.pop %v1118
    %1121 = vrot.lane.b32.xlu0 %v1119, 32
    %v1122 = vpop.permute.xlu0 %1121
    %v1124 = vmul.f32 %v1103, %v1122
    %v1125 = vld [vmem:[%s5] sm:$0xff]
    %v1126 = vld [vmem:[%s5 + $0x8] sm:$0xff]
    %v1127 = vld [vmem:[%s5 + $0x10] sm:$0xff]
    %v1128 = vld [vmem:[%s5 + $0x18] sm:$0xff]
    %v1129 = vld [vmem:[%s6] sm:$0xff]
    %v1130 = vld [vmem:[%s6 + $0x8] sm:$0xff]
    %v1131 = vld [vmem:[%s6 + $0x10] sm:$0xff]
    %v1132 = vld [vmem:[%s6 + $0x18] sm:$0xff]
    %v1133 = vsel %vm89, %v1054, 0
    %1135 = vmatpush.msra.mxu0 0.0
    %1136 = vmatpush.msra.mxu0 0.0
    %1137 = vmatpush.msra.mxu0 0.0
    %1138 = vmatpush.msra.mxu0 0.0
    %1139 = vmatpush.msra.mxu0 0.0
    %1140 = vmatpush.msra.mxu0 0.0
    %1141 = vmatpush.msra.mxu0 0.0
    %1142 = vmatpush.msra.mxu0 0.0
    %1143 = vmatpush.msra.mxu0 0.0
    %1144 = vmatpush.msra.mxu0 0.0
    %1145 = vmatpush.msra.mxu0 0.0
    %1146 = vmatpush.msra.mxu0 0.0
    %1147 = vmatpush.msra.mxu0 %v1132
    %1148 = vmatpush.msra.mxu0 %v1131
    %1149 = vmatpush.msra.mxu0 %v1130
    %1150 = vmatpush.msra.mxu0 %v1129
    %1151 = vmatmul.f32.gmra.mxu0 %v1133
    %v1152 = vpop.f32.mrf.mxu0
    %v1153 = vadd.f32 0.0, %v1152
    %1154 = vdwg.mxu0
    %v1156 = vrot.slane %v1124, 6
    %1157 = vrot.lane.b32.xlu0 %v1156, 64
    %v1158 = vpop.permute.xlu0 %1157
    %v1159 = vsel %vm89, %v1158, 0
    %1161 = vmatpush.msra.mxu0 0.0
    %1162 = vmatpush.msra.mxu0 0.0
    %1163 = vmatpush.msra.mxu0 0.0
    %1164 = vmatpush.msra.mxu0 0.0
    %1165 = vmatpush.msra.mxu0 0.0
    %1166 = vmatpush.msra.mxu0 0.0
    %1167 = vmatpush.msra.mxu0 0.0
    %1168 = vmatpush.msra.mxu0 0.0
    %1169 = vmatpush.msra.mxu0 0.0
    %1170 = vmatpush.msra.mxu0 0.0
    %1171 = vmatpush.msra.mxu0 0.0
    %1172 = vmatpush.msra.mxu0 0.0
    %1173 = vmatpush.msra.mxu0 %v1128
    %1174 = vmatpush.msra.mxu0 %v1127
    %1175 = vmatpush.msra.mxu0 %v1126
    %1176 = vmatpush.msra.mxu0 %v1125
    %1177 = vmatmul.f32.gmra.mxu0 %v1159
    %v1178 = vpop.f32.mrf.mxu0
    %v1179 = vadd.f32 %v1153, %v1178
    %1180 = vdwg.mxu0
    %v1181 = vld [vmem:[%s7] sm:$0x1]
    %v1182 = vadd.f32 %v1179, %v1181
    %v1183 = vxor.u32 %v1182, 2147483648
    %v1184 = vmul.f32 %v1183, 1.442695
    %v1185 = vpow.pop %v1184
    %v1186 = vadd.f32 %v1185, 1.0
    %v1187 = vrcp.pop %v1186
    %v1188 = vmul.f32 %v1186, %v1187
    %v1189 = vsub.f32 1.0, %v1188
    %v1190 = vmul.f32 %v1187, %v1189
    %v1191 = vadd.f32 %v1187, %v1190
    %vm1192 = vweird.f32 %v1186
    %vm1193 = vweird.f32 %v1187
    %vm1194 = vmor %vm1192, %vm1193
    %v1195 = vsel %vm1194, %v1187, %v1191
    %v1196 = vand.u32 2147483647, %v1186
    %vm1197 = vcmp.eq.f32.partialorder %v1196, 8.507059e+37
    %v1198 = vand.u32 %v1186, 2147483648
    %v1199 = vor.u32 1.1754944e-38, %v1198
    %v1200 = vsel %vm1197, %v1199, %v1195
    %v1201 = vmul.f32 1.0, %v1200
    %v1202 = vtanh.pop %v1182
    %v1203 = vmul.f32 %v1201, %v1045
    %1205 = vrot.lane.b32.xlu0 %v1202, 32
    %v1206 = vpop.permute.xlu0 %1205
    %v1208 = vmul.f32 %v1201, %v1206
    %1210 = vrot.lane.b32.xlu0 %v1208, 32
    %v1211 = vpop.permute.xlu0 %1210
    %v1213 = vadd.f32 %v1203, %v1211
    %v1214 = vtanh.pop %v1213
    %1216 = vrot.lane.b32.xlu0 %v1214, 32
    %v1217 = vpop.permute.xlu0 %1216
    %v1219 = vmul.f32 %v1201, %v1217
    %1221 = vrot.lane.b32.xlu0 %v1219, 64
    %v1222 = vpop.permute.xlu0 %1221
    %1224 = vst.msk [vmem:[#allocation2 + $0x6] sm:$0x1] %vm209, %v1222
    %v1225 = vld [vmem:[%s3] sm:$0xff]
    %v1226 = vld [vmem:[%s3 + $0x8] sm:$0xff]
    %v1227 = vld [vmem:[%s3 + $0x10] sm:$0xff]
    %v1228 = vld [vmem:[%s3 + $0x18] sm:$0xff]
    %1229 = vmatpush.msra.mxu0 0.0
    %1230 = vmatpush.msra.mxu0 0.0
    %1231 = vmatpush.msra.mxu0 0.0
    %1232 = vmatpush.msra.mxu0 0.0
    %1233 = vmatpush.msra.mxu0 0.0
    %1234 = vmatpush.msra.mxu0 0.0
    %1235 = vmatpush.msra.mxu0 0.0
    %1236 = vmatpush.msra.mxu0 0.0
    %1237 = vmatpush.msra.mxu0 0.0
    %1238 = vmatpush.msra.mxu0 0.0
    %1239 = vmatpush.msra.mxu0 0.0
    %1240 = vmatpush.msra.mxu0 0.0
    %1241 = vmatpush.msra.mxu0 %v1228
    %1242 = vmatpush.msra.mxu0 %v1227
    %1243 = vmatpush.msra.mxu0 %v1226
    %1244 = vmatpush.msra.mxu0 %v1225
    %1245 = vmatmul.f32.gmra.mxu0 %v1159
    %v1246 = vpop.f32.mrf.mxu0
    %v1247 = vadd.f32 0.0, %v1246
    %1248 = vdwg.mxu0
    %v1250 = vrot.slane %v1247, 1
    %v1252 = vadd.f32 %v111, %v1250
    %v1253 = vxor.u32 %v1252, 2147483648
    %v1254 = vmul.f32 %v1253, 1.442695
    %v1255 = vpow.pop %v1254
    %v1256 = vadd.f32 %v1255, 1.0
    %v1257 = vrcp.pop %v1256
    %v1258 = vmul.f32 %v1256, %v1257
    %v1259 = vsub.f32 1.0, %v1258
    %v1260 = vmul.f32 %v1257, %v1259
    %v1261 = vadd.f32 %v1257, %v1260
    %vm1262 = vweird.f32 %v1256
    %vm1263 = vweird.f32 %v1257
    %vm1264 = vmor %vm1262, %vm1263
    %v1265 = vsel %vm1264, %v1257, %v1261
    %v1266 = vand.u32 2147483647, %v1256
    %vm1267 = vcmp.eq.f32.partialorder %v1266, 8.507059e+37
    %v1268 = vand.u32 %v1256, 2147483648
    %v1269 = vor.u32 1.1754944e-38, %v1268
    %v1270 = vsel %vm1267, %v1269, %v1265
    %v1271 = vmul.f32 1.0, %v1270
    %v1272 = vtanh.pop %v1252
    %v1274 = vrot.slane %v1118, 7
    %v1276 = vmul.f32 %v1271, %v1274
    %1278 = vrot.lane.b32.xlu0 %v1272, 32
    %v1279 = vpop.permute.xlu0 %1278
    %v1281 = vmul.f32 %v1271, %v1279
    %1283 = vrot.lane.b32.xlu0 %v1281, 32
    %v1284 = vpop.permute.xlu0 %1283
    %v1286 = vadd.f32 %v1276, %v1284
    %v1287 = vtanh.pop %v1286
    %1289 = vrot.lane.b32.xlu0 %v1287, 32
    %v1290 = vpop.permute.xlu0 %1289
    %v1292 = vmul.f32 %v1271, %v1290
    %v1293 = vld [vmem:[%s5] sm:$0xff]
    %v1294 = vld [vmem:[%s5 + $0x8] sm:$0xff]
    %v1295 = vld [vmem:[%s5 + $0x10] sm:$0xff]
    %v1296 = vld [vmem:[%s5 + $0x18] sm:$0xff]
    %v1297 = vld [vmem:[%s6] sm:$0xff]
    %v1298 = vld [vmem:[%s6 + $0x8] sm:$0xff]
    %v1299 = vld [vmem:[%s6 + $0x10] sm:$0xff]
    %v1300 = vld [vmem:[%s6 + $0x18] sm:$0xff]
    %v1301 = vsel %vm89, %v1222, 0
    %1303 = vmatpush.msra.mxu0 0.0
    %1304 = vmatpush.msra.mxu0 0.0
    %1305 = vmatpush.msra.mxu0 0.0
    %1306 = vmatpush.msra.mxu0 0.0
    %1307 = vmatpush.msra.mxu0 0.0
    %1308 = vmatpush.msra.mxu0 0.0
    %1309 = vmatpush.msra.mxu0 0.0
    %1310 = vmatpush.msra.mxu0 0.0
    %1311 = vmatpush.msra.mxu0 0.0
    %1312 = vmatpush.msra.mxu0 0.0
    %1313 = vmatpush.msra.mxu0 0.0
    %1314 = vmatpush.msra.mxu0 0.0
    %1315 = vmatpush.msra.mxu0 %v1300
    %1316 = vmatpush.msra.mxu0 %v1299
    %1317 = vmatpush.msra.mxu0 %v1298
    %1318 = vmatpush.msra.mxu0 %v1297
    %1319 = vmatmul.f32.gmra.mxu0 %v1301
    %v1320 = vpop.f32.mrf.mxu0
    %v1321 = vadd.f32 0.0, %v1320
    %1322 = vdwg.mxu0
    %v1324 = vrot.slane %v1292, 7
    %1325 = vrot.lane.b32.xlu0 %v1324, 64
    %v1326 = vpop.permute.xlu0 %1325
    %v1327 = vsel %vm89, %v1326, 0
    %1329 = vmatpush.msra.mxu0 0.0
    %1330 = vmatpush.msra.mxu0 0.0
    %1331 = vmatpush.msra.mxu0 0.0
    %1332 = vmatpush.msra.mxu0 0.0
    %1333 = vmatpush.msra.mxu0 0.0
    %1334 = vmatpush.msra.mxu0 0.0
    %1335 = vmatpush.msra.mxu0 0.0
    %1336 = vmatpush.msra.mxu0 0.0
    %1337 = vmatpush.msra.mxu0 0.0
    %1338 = vmatpush.msra.mxu0 0.0
    %1339 = vmatpush.msra.mxu0 0.0
    %1340 = vmatpush.msra.mxu0 0.0
    %1341 = vmatpush.msra.mxu0 %v1296
    %1342 = vmatpush.msra.mxu0 %v1295
    %1343 = vmatpush.msra.mxu0 %v1294
    %1344 = vmatpush.msra.mxu0 %v1293
    %1345 = vmatmul.f32.gmra.mxu0 %v1327
    %v1346 = vpop.f32.mrf.mxu0
    %v1347 = vadd.f32 %v1321, %v1346
    %1348 = vdwg.mxu0
    %v1349 = vld [vmem:[%s7] sm:$0x1]
    %v1350 = vadd.f32 %v1347, %v1349
    %v1351 = vxor.u32 %v1350, 2147483648
    %v1352 = vmul.f32 %v1351, 1.442695
    %v1353 = vpow.pop %v1352
    %v1354 = vadd.f32 %v1353, 1.0
    %v1355 = vrcp.pop %v1354
    %v1356 = vmul.f32 %v1354, %v1355
    %v1357 = vsub.f32 1.0, %v1356
    %v1358 = vmul.f32 %v1355, %v1357
    %v1359 = vadd.f32 %v1355, %v1358
    %vm1360 = vweird.f32 %v1354
    %vm1361 = vweird.f32 %v1355
    %vm1362 = vmor %vm1360, %vm1361
    %v1363 = vsel %vm1362, %v1355, %v1359
    %v1364 = vand.u32 2147483647, %v1354
    %vm1365 = vcmp.eq.f32.partialorder %v1364, 8.507059e+37
    %v1366 = vand.u32 %v1354, 2147483648
    %v1367 = vor.u32 1.1754944e-38, %v1366
    %v1368 = vsel %vm1365, %v1367, %v1363
    %v1369 = vmul.f32 1.0, %v1368
    %v1370 = vtanh.pop %v1350
    %v1371 = vmul.f32 %v1369, %v1213
    %1373 = vrot.lane.b32.xlu0 %v1370, 32
    %v1374 = vpop.permute.xlu0 %1373
    %v1376 = vmul.f32 %v1369, %v1374
    %1378 = vrot.lane.b32.xlu0 %v1376, 32
    %v1379 = vpop.permute.xlu0 %1378
    %v1381 = vadd.f32 %v1371, %v1379
    %v1382 = vtanh.pop %v1381
    %1384 = vrot.lane.b32.xlu0 %v1382, 32
    %v1385 = vpop.permute.xlu0 %1384
    %v1387 = vmul.f32 %v1369, %v1385
    %1389 = vrot.lane.b32.xlu0 %v1387, 64
    %v1390 = vpop.permute.xlu0 %1389
    %1392 = vst.msk [vmem:[#allocation2 + $0x7] sm:$0x1] %vm209, %v1390
    %v1393 = vld [vmem:[#allocation2] sm:$0xff]
    %v1394 = vld [vmem:[%s8] sm:$0xff]
    %v1395 = vld [vmem:[%s8 + $0x8] sm:$0xff]
    %v1396 = vld [vmem:[%s8 + $0x10] sm:$0xff]
    %v1397 = vld [vmem:[%s8 + $0x18] sm:$0xff]
    %v1398 = vld [vmem:[%s9] sm:$0x1]
    %v1400 = vperm.slane %v1398, 0
    %v1403 = vsel %vm89, %v1393, 0
    %1405 = vmatpush.msra.mxu0 0.0
    %1406 = vmatpush.msra.mxu0 0.0
    %1407 = vmatpush.msra.mxu0 0.0
    %1408 = vmatpush.msra.mxu0 0.0
    %1409 = vmatpush.msra.mxu0 0.0
    %1410 = vmatpush.msra.mxu0 0.0
    %1411 = vmatpush.msra.mxu0 0.0
    %1412 = vmatpush.msra.mxu0 0.0
    %1413 = vmatpush.msra.mxu0 0.0
    %1414 = vmatpush.msra.mxu0 0.0
    %1415 = vmatpush.msra.mxu0 0.0
    %1416 = vmatpush.msra.mxu0 0.0
    %1417 = vmatpush.msra.mxu0 %v1397
    %1418 = vmatpush.msra.mxu0 %v1396
    %1419 = vmatpush.msra.mxu0 %v1395
    %1420 = vmatpush.msra.mxu0 %v1394
    %1421 = vmatmul.f32.gmra.mxu0 %v1403
    %v1422 = vpop.f32.mrf.mxu0
    %v1423 = vadd.f32 %v1400, %v1422
    %1424 = vdwg.mxu0
    %v1425 = vmax.f32 %v1423, 0.0
    %1426 = vmax.xlane.f32.xlu0 %v1425
    %v1427 = vpop.xlane.xlu0 %1426
    %v1428 = vsub.f32 %v1425, %v1427
    %v1429 = vmul.f32 %v1428, 1.442695
    %v1430 = vpow.pop %v1429
    %1431 = vadd.xlane.f32.xlu0 %v1430
    %v1432 = vpop.xlane.xlu0 %1431
    %v1433 = vlog2.pop %v1432
    %v1434 = vmul.f32 %v1433, 0.6931472
    %v1435 = vsub.f32 %v1428, %v1434
    %1436 = vst [vmem:[#allocation3] sm:$0xff] %v1435
    // Predicated region
    $region42: #{tpu_custom_call.1} parent=1 // pred_check
      _
    $region43: #{tpu_custom_call.1} parent=1 // pred_check_branch
      %1438 = sbr.rel (0) target = $region45
    $region44: #{tpu_custom_call.1} parent=1 // pred_region
      %1440 = vsyncadd [#allocation4], 0
      %s1442 = sshll.u32 [#allocation3], 4
      %s1443 = int_to_ptr.vmem [resolvable:$true] %s1442
      %s1444 = sshll.u32 %s10, 4
      %s1445 = int_to_ptr.hbm [resolvable:$true] %s1444
      %1447 = dma.vmem_to_hbm [thread:$0]  %s1443, 128, %s1445, [#allocation4]
    $region45: #{tpu_custom_call.1} parent=1 // pred_fallthru
      _
    // Predicated region
    $region46: #{tpu_custom_call.1} parent=1 // pred_check
      _
    $region47: #{tpu_custom_call.1} parent=1 // pred_check_branch
      %1449 = sbr.rel (0) target = $region49
    $region48: #{tpu_custom_call.1} parent=1 // pred_region
      %1451 = dma.done [#allocation4], 128
    $region49: #{tpu_custom_call.1} parent=1 // pred_fallthru
      _
    %1452 = vsyncpa [#allocation4], 1

</llo_original>
